<compile_context>
chip_gen: v7x
topology: tpu7x:2x2x1
jax: 0.10.0
libtpu: 0.0.40
codegen_flags: <defaults>
</compile_context>

<pallas_src>
import functools

import jax
import jax.numpy as jnp
from jax.experimental import pallas as pl
from jax.experimental.pallas import tpu as pltpu

LANES = 128


def _round_up(x, m):
    return ((x + m - 1) // m) * m


def _choose_chunk(T, max_chunk=128):
    """Whole sequence if it fits in one chunk, else a fixed large chunk.
    The grid uses cdiv + tail masking, so TC does not need to divide T."""
    return T if T <= max_chunk else max_chunk


# ----------------------------------------------------------------------------
# Pallas kernel: one grid step == `chunk` timesteps of the GRU recurrence plus
# the fused mu|sigma heads.  Per timestep only ONE matmul sits on the serial
# critical path: gh = h @ W_hh_fused (B,GP)@(GP,3GP); the head matmul and store
# are off the dependency chain and overlap with the next step.
# ----------------------------------------------------------------------------
def gru_fused_kernel(gi_ref, h0_ref, wh_ref, bhn_ref, whead_ref, bhead_ref,   # in
                     out_ref, hn_ref,                                         # out
                     *, gp, chunk, seq_len, unroll):
    """
    gi_ref    : (TC, B, 3*GP) hoisted x @ W_ih^T + bias; gate g at lanes [g*GP, g*GP+H)
    h0_ref    : (B, GP)       initial hidden state (lane padded with zeros)
    wh_ref    : (GP, 3*GP)    fused recurrent weights W_hh^T, lane-padded gates (r,z,n)
    bhn_ref   : (1, GP)       hidden bias of the n gate (must be scaled by r)
    whead_ref : (GP, 2*Dout)  fused [W_mu | W_sigma]^T (zero rows beyond H)
    bhead_ref : (1, 2*Dout)   fused [b_mu | b_sigma]
    out_ref   : (TC, B, 2*Dout) per-timestep mu|sigma chunk
    hn_ref    : (B, GP)       resident output block carrying h across chunks
    """
    c = pl.program_id(0)

    # Initialize the carried hidden state (resident hn block) on the first chunk.
    @pl.when(c == 0)
    def _():
        hn_ref[...] = h0_ref[...]

    # Small constant operands: load once per chunk, reused every step.
    wh = wh_ref[...]        # (GP, 3GP)
    bhn = bhn_ref[...]      # (1, GP)
    whead = whead_ref[...]  # (GP, 2*Dout)
    bhead = bhead_ref[...]  # (1, 2*Dout)

    has_tail = (seq_len % chunk) != 0
    if has_tail:
        valid = jnp.minimum(chunk, seq_len - c * chunk)

    def step(t, h):
        gi_t = gi_ref[t]                                               # (B, 3GP)
        gh = jnp.dot(h, wh, preferred_element_type=jnp.float32)        # (B, 3GP)
        # r and z: one whole-vreg add over 2*GP lanes + one EUP sigmoid call.
        rz = jax.nn.sigmoid(gi_t[:, :2 * gp] + gh[:, :2 * gp])
        r = rz[:, :gp]
        z = rz[:, gp:]
        # n = tanh(x@Win + bin + r * (h@Whn + bhn))  -- bhn inside the r-scale.
        n = jnp.tanh(gi_t[:, 2 * gp:] + r * (gh[:, 2 * gp:] + bhn))
        h_new = (1.0 - z) * n + z * h
        # Fused mu|sigma heads: off the serial chain, hs never leaves VMEM.
        out_ref[t] = jnp.dot(h_new, whead,
                             preferred_element_type=jnp.float32) + bhead
        if has_tail:
            # Only advance h for valid timesteps of the (possibly partial) chunk.
            keep = (t < valid).astype(jnp.float32)
            return h + keep * (h_new - h)
        return h_new

    h_last = jax.lax.fori_loop(0, chunk, step, hn_ref[...], unroll=unroll)
    hn_ref[...] = h_last


# ----------------------------------------------------------------------------
# Wrapper: batch_first (B, T, Din) in, (mu, sigma, hn) out, like the PyTorch module.
# ----------------------------------------------------------------------------
@jax.jit
def gru_forward(x, hidden, params):
    B, T, Din = x.shape
    H = params["wh"].shape[0]
    Dout = params["wmu"].shape[1]
    GP = _round_up(H, LANES)
    HIGHEST = jax.lax.Precision.HIGHEST

    x = x.astype(jnp.float32)
    h0 = hidden[0].astype(jnp.float32)                                  # (B, H)

    wi = params["wi"].astype(jnp.float32)     # (Din, 3H), gate order (r, z, n)
    wh = params["wh"].astype(jnp.float32)     # (H,   3H)
    bi = params["bi"].astype(jnp.float32)     # (3H,)
    bh = params["bh"].astype(jnp.float32)     # (3H,)

    def pad_gate_cols(w):
        """(rows, 3H) -> (rows, 3*GP) with gate g at lane offset g*GP, zero-padded."""
        out = jnp.zeros((w.shape[0], 3 * GP), jnp.float32)
        for g in range(3):
            out = out.at[:, g * GP:g * GP + H].set(w[:, g * H:(g + 1) * H])
        return out

    # Fold bh_r / bh_z into the hoisted bias; bh_n stays separate (scaled by r).
    bias_g = jnp.concatenate(
        [bi[0:H] + bh[0:H], bi[H:2 * H] + bh[H:2 * H], bi[2 * H:]], axis=0)     # (3H,)
    bias_pad = jnp.zeros((3 * GP,), jnp.float32)
    for g in range(3):
        bias_pad = bias_pad.at[g * GP:g * GP + H].set(bias_g[g * H:(g + 1) * H])

    wi_pad = pad_gate_cols(wi)                                                   # (Din, 3GP)
    wh_pad = jnp.zeros((GP, 3 * GP), jnp.float32).at[:H, :].set(pad_gate_cols(wh))
    bhn_pad = jnp.zeros((1, GP), jnp.float32).at[0, :H].set(bh[2 * H:])
    h0_pad = jnp.zeros((B, GP), jnp.float32).at[:, :H].set(h0)
    whead = jnp.zeros((GP, 2 * Dout), jnp.float32)
    whead = whead.at[:H, :Dout].set(params["wmu"].astype(jnp.float32))
    whead = whead.at[:H, Dout:].set(params["wsig"].astype(jnp.float32))
    bhead = jnp.concatenate([params["bmu"], params["bsig"]]).astype(
        jnp.float32).reshape(1, 2 * Dout)

    # Hoisted input projection over the whole sequence, produced time-major and
    # lane-padded directly (transpose fused into the matmul), fp32 precision pinned.
    gi = jnp.einsum("btd,dg->tbg", x, wi_pad, precision=HIGHEST) + bias_pad     # (T,B,3GP)

    TC = _choose_chunk(T)
    n_chunks = pl.cdiv(T, TC)
    unroll = True if TC <= 16 else 8

    kernel = functools.partial(gru_fused_kernel,
                               gp=GP, chunk=TC, seq_len=T, unroll=unroll)

    grid_spec = pltpu.PrefetchScalarGridSpec(
        num_scalar_prefetch=0,
        grid=(n_chunks,),
        in_specs=[
            pl.BlockSpec((TC, B, 3 * GP), lambda c: (c, 0, 0)),   # gi chunk
            pl.BlockSpec((B, GP), lambda c: (0, 0)),              # h0 (padded)
            pl.BlockSpec((GP, 3 * GP), lambda c: (0, 0)),         # fused W_hh^T
            pl.BlockSpec((1, GP), lambda c: (0, 0)),              # bh_n
            pl.BlockSpec((GP, 2 * Dout), lambda c: (0, 0)),       # fused head weights
            pl.BlockSpec((1, 2 * Dout), lambda c: (0, 0)),        # fused head bias
        ],
        out_specs=[
            pl.BlockSpec((TC, B, 2 * Dout), lambda c: (c, 0, 0)), # mu|sigma chunk
            pl.BlockSpec((B, GP), lambda c: (0, 0)),              # final hidden state
        ],
        scratch_shapes=[],
    )

    heads, hn_pad = pl.pallas_call(
        kernel,
        out_shape=(
            jax.ShapeDtypeStruct((T, B, 2 * Dout), jnp.float32),
            jax.ShapeDtypeStruct((B, GP), jnp.float32),
        ),
        grid_spec=grid_spec,
        compiler_params=pltpu.CompilerParams(
            dimension_semantics=("arbitrary",),      # time recurrence is sequential
            vmem_limit_bytes=32 * 1024 * 1024,       # safe on v5e/v6e/v7x
        ),
    )(gi, h0_pad, wh_pad, bhn_pad, whead, bhead)

    # Split / transpose back to batch_first; strip lane padding from hn.
    mu = jnp.transpose(heads[:, :, :Dout], (1, 0, 2))        # (B, T, Dout)
    sigma = jnp.transpose(heads[:, :, Dout:], (1, 0, 2))     # (B, T, Dout)
    hn = hn_pad[:, :H][None]                                 # (1, B, H)
    return mu, sigma, hn


# ----------------------------------------------------------------------------
# Pure-JAX reference (same math as torch.nn.GRU + Linear heads) for checking.
# Intentionally does NOT use the hoisting / padding / bias folding.
# ----------------------------------------------------------------------------
def gru_reference(x, hidden, params):
    H = params["wh"].shape[0]
    HIGHEST = jax.lax.Precision.HIGHEST
    x_tm = jnp.transpose(x, (1, 0, 2)).astype(jnp.float32)   # (T, B, Din)
    h0 = hidden[0].astype(jnp.float32)
    wi, wh, bi, bh = params["wi"], params["wh"], params["bi"], params["bh"]

    def step(h, x_t):
        gi = jnp.dot(x_t, wi, precision=HIGHEST) + bi        # (B, 3H)
        gh = jnp.dot(h, wh, precision=HIGHEST) + bh          # (B, 3H)
        r = jax.nn.sigmoid(gi[:, 0:H] + gh[:, 0:H])
        z = jax.nn.sigmoid(gi[:, H:2 * H] + gh[:, H:2 * H])
        n = jnp.tanh(gi[:, 2 * H:] + r * gh[:, 2 * H:])
        h_new = (1.0 - z) * n + z * h
        return h_new, h_new

    hT, hs = jax.lax.scan(step, h0, x_tm)                    # hs: (T, B, H)
    mu = jnp.einsum("tbh,hd->btd", hs, params["wmu"], precision=HIGHEST) + params["bmu"]
    sigma = jnp.einsum("tbh,hd->btd", hs, params["wsig"], precision=HIGHEST) + params["bsig"]
    return mu, sigma, hT[None]


def make_params(key, Din, Dhidden, Dout):
    """Deterministic synthetic parameters (uniform +/-1/sqrt(H), like torch default).

    Gate weights are stored fused and transposed: wi = W_ih^T as (Din, 3H),
    wh = W_hh^T as (H, 3H), gate order (r, z, n)."""
    ks = jax.random.split(key, 8)
    s = 1.0 / jnp.sqrt(jnp.float32(Dhidden))
    u = lambda k, shape: jax.random.uniform(k, shape, jnp.float32, -s, s)
    return {
        "wi": u(ks[0], (Din, 3 * Dhidden)),
        "wh": u(ks[1], (Dhidden, 3 * Dhidden)),
        "bi": u(ks[2], (3 * Dhidden,)),
        "bh": u(ks[3], (3 * Dhidden,)),
        "wmu": u(ks[4], (Dhidden, Dout)),
        "bmu": u(ks[5], (Dout,)),
        "wsig": u(ks[6], (Dhidden, Dout)),
        "bsig": u(ks[7], (Dout,)),
    }


if __name__ == "__main__":
    B, T, Din, Dhidden, Dout = 2, 8, 4, 32, 16

    key = jax.random.PRNGKey(0)
    k_x, k_p = jax.random.split(key)
    x = jax.random.normal(k_x, (B, T, Din), jnp.float32)
    params = make_params(k_p, Din, Dhidden, Dout)
    hidden = jnp.zeros((1, B, Dhidden), jnp.float32)   # hidden=None in PyTorch => zeros

    mu, sigma, hn = gru_forward(x, hidden, params)
    jax.block_until_ready((mu, sigma, hn))

    mu_r, sigma_r, hn_r = gru_reference(x, hidden, params)
    assert mu.shape == (B, T, Dout) and sigma.shape == (B, T, Dout)
    assert hn.shape == (1, B, Dhidden)
    assert jnp.allclose(mu, mu_r, rtol=1e-5, atol=1e-5)
    assert jnp.allclose(sigma, sigma_r, rtol=1e-5, atol=1e-5)
    assert jnp.allclose(hn, hn_r, rtol=1e-5, atol=1e-5)

    print("KERNEL_OK")
</pallas_src>

<mosaic_0001>
module attributes {stable_mosaic.version = 11 : i64} {
  func.func @gru_fused_kernel(%arg0: i32, %arg1: memref<8x2x384xf32, #tpu.memory_space<vmem>>, %arg2: memref<2x128xf32, #tpu.memory_space<vmem>>, %arg3: memref<128x384xf32, #tpu.memory_space<vmem>>, %arg4: memref<1x128xf32, #tpu.memory_space<vmem>>, %arg5: memref<128x32xf32, #tpu.memory_space<vmem>>, %arg6: memref<1x32xf32, #tpu.memory_space<vmem>>, %arg7: memref<8x2x32xf32, #tpu.memory_space<vmem>>, %arg8: memref<2x128xf32, #tpu.memory_space<vmem>>) attributes {dimension_semantics = [#tpu.dimension_semantics<arbitrary>], iteration_bounds = array<i64: 1>, scalar_prefetch = 0 : i64, scratch_operands = 0 : i64, tpu.core_type = #tpu.core_type<tc>, window_params = [{transform_indices = @transform_0, window_bounds = array<i64: 8, 2, 384>}, {pipeline_mode = #tpu.pipeline_mode<synchronous>, transform_indices = @transform_1, window_bounds = array<i64: 2, 128>}, {pipeline_mode = #tpu.pipeline_mode<synchronous>, transform_indices = @transform_2, window_bounds = array<i64: 128, 384>}, {pipeline_mode = #tpu.pipeline_mode<synchronous>, transform_indices = @transform_3, window_bounds = array<i64: 1, 128>}, {pipeline_mode = #tpu.pipeline_mode<synchronous>, transform_indices = @transform_4, window_bounds = array<i64: 128, 32>}, {pipeline_mode = #tpu.pipeline_mode<synchronous>, transform_indices = @transform_5, window_bounds = array<i64: 1, 32>}, {transform_indices = @transform_6, window_bounds = array<i64: 8, 2, 32>}, {pipeline_mode = #tpu.pipeline_mode<synchronous>, transform_indices = @transform_7, window_bounds = array<i64: 2, 128>}]} {
    %c0_i32 = arith.constant 0 : i32
    %0 = arith.cmpi eq, %arg0, %c0_i32 : i32
    %1 = arith.extui %0 : i1 to i32
    %c0_i32_0 = arith.constant 0 : i32
    %2 = arith.cmpi ne, %1, %c0_i32_0 : i32
    scf.if %2 {
      %c0_76 = arith.constant 0 : index
      %c0_77 = arith.constant 0 : index
      %273 = vector.load %arg2[%c0_76, %c0_77] : memref<2x128xf32, #tpu.memory_space<vmem>>, vector<2x128xf32>
      %c0_78 = arith.constant 0 : index
      %c0_79 = arith.constant 0 : index
      %274 = vector.load %arg8[%c0_78, %c0_79] : memref<2x128xf32, #tpu.memory_space<vmem>>, vector<2x128xf32>
      tpu.vector_store %arg8[%c0_78, %c0_79], %273 {strides = array<i32>} : memref<2x128xf32, #tpu.memory_space<vmem>>, vector<2x128xf32>,
    } else {
    }
    %c0 = arith.constant 0 : index
    %c0_1 = arith.constant 0 : index
    %3 = vector.load %arg3[%c0, %c0_1] : memref<128x384xf32, #tpu.memory_space<vmem>>, vector<128x384xf32>
    %c0_2 = arith.constant 0 : index
    %c0_3 = arith.constant 0 : index
    %4 = vector.load %arg4[%c0_2, %c0_3] : memref<1x128xf32, #tpu.memory_space<vmem>>, vector<1x128xf32>
    %c0_4 = arith.constant 0 : index
    %c0_5 = arith.constant 0 : index
    %5 = vector.load %arg5[%c0_4, %c0_5] : memref<128x32xf32, #tpu.memory_space<vmem>>, vector<128x32xf32>
    %c0_6 = arith.constant 0 : index
    %c0_7 = arith.constant 0 : index
    %6 = vector.load %arg6[%c0_6, %c0_7] : memref<1x32xf32, #tpu.memory_space<vmem>>, vector<1x32xf32>
    %c0_8 = arith.constant 0 : index
    %c0_9 = arith.constant 0 : index
    %7 = vector.load %arg8[%c0_8, %c0_9] : memref<2x128xf32, #tpu.memory_space<vmem>>, vector<2x128xf32>
    %c0_i32_10 = arith.constant 0 : i32
    %8 = arith.index_cast %c0_i32_10 : i32 to index
    %c0_11 = arith.constant 0 : index
    %c0_12 = arith.constant 0 : index
    %9 = vector.load %arg1[%8, %c0_11, %c0_12] : memref<8x2x384xf32, #tpu.memory_space<vmem>>, vector<1x2x384xf32>
    %10 = vector.shape_cast %9 : vector<1x2x384xf32> to vector<2x384xf32>
    %cst = arith.constant dense<0.000000e+00> : vector<2x384xf32>
    %11 = tpu.matmul %7, %3, %cst {dimension_numbers = #tpu.dot_dimension_numbers<[1], [0], [0], [1], [0, 0, 1, 1], [], []>} : vector<2x128xf32>, vector<128x384xf32>, vector<2x384xf32> -> vector<2x384xf32>
    %12 = vector.extract_strided_slice %10 {offsets = [0, 0], sizes = [2, 256], strides = [1, 1]} : vector<2x384xf32> to vector<2x256xf32>
    %13 = vector.extract_strided_slice %11 {offsets = [0, 0], sizes = [2, 256], strides = [1, 1]} : vector<2x384xf32> to vector<2x256xf32>
    %14 = arith.addf %12, %13 : vector<2x256xf32>
    %15 = arith.negf %14 : vector<2x256xf32>
    %16 = math.exp %15 : vector<2x256xf32>
    %cst_13 = arith.constant 1.000000e+00 : f32
    %17 = vector.broadcast %cst_13 : f32 to vector<2x256xf32>
    %18 = arith.addf %17, %16 : vector<2x256xf32>
    %19 = arith.divf %17, %18 : vector<2x256xf32>
    %20 = vector.extract_strided_slice %19 {offsets = [0, 0], sizes = [2, 128], strides = [1, 1]} : vector<2x256xf32> to vector<2x128xf32>
    %21 = vector.extract_strided_slice %19 {offsets = [0, 128], sizes = [2, 128], strides = [1, 1]} : vector<2x256xf32> to vector<2x128xf32>
    %22 = vector.extract_strided_slice %10 {offsets = [0, 256], sizes = [2, 128], strides = [1, 1]} : vector<2x384xf32> to vector<2x128xf32>
    %23 = vector.extract_strided_slice %11 {offsets = [0, 256], sizes = [2, 128], strides = [1, 1]} : vector<2x384xf32> to vector<2x128xf32>
    %24 = vector.broadcast %4 : vector<1x128xf32> to vector<2x128xf32>
    %25 = arith.addf %23, %24 : vector<2x128xf32>
    %26 = arith.mulf %20, %25 : vector<2x128xf32>
    %27 = arith.addf %22, %26 : vector<2x128xf32>
    %28 = math.tanh %27 : vector<2x128xf32>
    %cst_14 = arith.constant 1.000000e+00 : f32
    %29 = vector.broadcast %cst_14 : f32 to vector<2x128xf32>
    %30 = arith.subf %29, %21 : vector<2x128xf32>
    %31 = arith.mulf %30, %28 : vector<2x128xf32>
    %32 = arith.mulf %21, %7 : vector<2x128xf32>
    %33 = arith.addf %31, %32 : vector<2x128xf32>
    %cst_15 = arith.constant dense<0.000000e+00> : vector<2x32xf32>
    %34 = tpu.matmul %33, %5, %cst_15 {dimension_numbers = #tpu.dot_dimension_numbers<[1], [0], [0], [1], [0, 0, 1, 1], [], []>} : vector<2x128xf32>, vector<128x32xf32>, vector<2x32xf32> -> vector<2x32xf32>
    %35 = vector.broadcast %6 : vector<1x32xf32> to vector<2x32xf32>
    %36 = arith.addf %34, %35 : vector<2x32xf32>
    %37 = arith.index_cast %c0_i32_10 : i32 to index
    %c0_16 = arith.constant 0 : index
    %c0_17 = arith.constant 0 : index
    %38 = vector.load %arg7[%37, %c0_16, %c0_17] : memref<8x2x32xf32, #tpu.memory_space<vmem>>, vector<1x2x32xf32>
    %39 = vector.shape_cast %38 : vector<1x2x32xf32> to vector<2x32xf32>
    %40 = vector.shape_cast %36 : vector<2x32xf32> to vector<1x2x32xf32>
    tpu.vector_store %arg7[%37, %c0_16, %c0_17], %40 {strides = array<i32>} : memref<8x2x32xf32, #tpu.memory_space<vmem>>, vector<1x2x32xf32>,
    %c1_i32 = arith.constant 1 : i32
    %41 = arith.index_cast %c1_i32 : i32 to index
    %c0_18 = arith.constant 0 : index
    %c0_19 = arith.constant 0 : index
    %42 = vector.load %arg1[%41, %c0_18, %c0_19] : memref<8x2x384xf32, #tpu.memory_space<vmem>>, vector<1x2x384xf32>
    %43 = vector.shape_cast %42 : vector<1x2x384xf32> to vector<2x384xf32>
    %cst_20 = arith.constant dense<0.000000e+00> : vector<2x384xf32>
    %44 = tpu.matmul %33, %3, %cst_20 {dimension_numbers = #tpu.dot_dimension_numbers<[1], [0], [0], [1], [0, 0, 1, 1], [], []>} : vector<2x128xf32>, vector<128x384xf32>, vector<2x384xf32> -> vector<2x384xf32>
    %45 = vector.extract_strided_slice %43 {offsets = [0, 0], sizes = [2, 256], strides = [1, 1]} : vector<2x384xf32> to vector<2x256xf32>
    %46 = vector.extract_strided_slice %44 {offsets = [0, 0], sizes = [2, 256], strides = [1, 1]} : vector<2x384xf32> to vector<2x256xf32>
    %47 = arith.addf %45, %46 : vector<2x256xf32>
    %48 = arith.negf %47 : vector<2x256xf32>
    %49 = math.exp %48 : vector<2x256xf32>
    %cst_21 = arith.constant 1.000000e+00 : f32
    %50 = vector.broadcast %cst_21 : f32 to vector<2x256xf32>
    %51 = arith.addf %50, %49 : vector<2x256xf32>
    %52 = arith.divf %50, %51 : vector<2x256xf32>
    %53 = vector.extract_strided_slice %52 {offsets = [0, 0], sizes = [2, 128], strides = [1, 1]} : vector<2x256xf32> to vector<2x128xf32>
    %54 = vector.extract_strided_slice %52 {offsets = [0, 128], sizes = [2, 128], strides = [1, 1]} : vector<2x256xf32> to vector<2x128xf32>
    %55 = vector.extract_strided_slice %43 {offsets = [0, 256], sizes = [2, 128], strides = [1, 1]} : vector<2x384xf32> to vector<2x128xf32>
    %56 = vector.extract_strided_slice %44 {offsets = [0, 256], sizes = [2, 128], strides = [1, 1]} : vector<2x384xf32> to vector<2x128xf32>
    %57 = vector.broadcast %4 : vector<1x128xf32> to vector<2x128xf32>
    %58 = arith.addf %56, %57 : vector<2x128xf32>
    %59 = arith.mulf %53, %58 : vector<2x128xf32>
    %60 = arith.addf %55, %59 : vector<2x128xf32>
    %61 = math.tanh %60 : vector<2x128xf32>
    %cst_22 = arith.constant 1.000000e+00 : f32
    %62 = vector.broadcast %cst_22 : f32 to vector<2x128xf32>
    %63 = arith.subf %62, %54 : vector<2x128xf32>
    %64 = arith.mulf %63, %61 : vector<2x128xf32>
    %65 = arith.mulf %54, %33 : vector<2x128xf32>
    %66 = arith.addf %64, %65 : vector<2x128xf32>
    %cst_23 = arith.constant dense<0.000000e+00> : vector<2x32xf32>
    %67 = tpu.matmul %66, %5, %cst_23 {dimension_numbers = #tpu.dot_dimension_numbers<[1], [0], [0], [1], [0, 0, 1, 1], [], []>} : vector<2x128xf32>, vector<128x32xf32>, vector<2x32xf32> -> vector<2x32xf32>
    %68 = vector.broadcast %6 : vector<1x32xf32> to vector<2x32xf32>
    %69 = arith.addf %67, %68 : vector<2x32xf32>
    %70 = arith.index_cast %c1_i32 : i32 to index
    %c0_24 = arith.constant 0 : index
    %c0_25 = arith.constant 0 : index
    %71 = vector.load %arg7[%70, %c0_24, %c0_25] : memref<8x2x32xf32, #tpu.memory_space<vmem>>, vector<1x2x32xf32>
    %72 = vector.shape_cast %71 : vector<1x2x32xf32> to vector<2x32xf32>
    %73 = vector.shape_cast %69 : vector<2x32xf32> to vector<1x2x32xf32>
    tpu.vector_store %arg7[%70, %c0_24, %c0_25], %73 {strides = array<i32>} : memref<8x2x32xf32, #tpu.memory_space<vmem>>, vector<1x2x32xf32>,
    %c2_i32 = arith.constant 2 : i32
    %74 = arith.index_cast %c2_i32 : i32 to index
    %c0_26 = arith.constant 0 : index
    %c0_27 = arith.constant 0 : index
    %75 = vector.load %arg1[%74, %c0_26, %c0_27] : memref<8x2x384xf32, #tpu.memory_space<vmem>>, vector<1x2x384xf32>
    %76 = vector.shape_cast %75 : vector<1x2x384xf32> to vector<2x384xf32>
    %cst_28 = arith.constant dense<0.000000e+00> : vector<2x384xf32>
    %77 = tpu.matmul %66, %3, %cst_28 {dimension_numbers = #tpu.dot_dimension_numbers<[1], [0], [0], [1], [0, 0, 1, 1], [], []>} : vector<2x128xf32>, vector<128x384xf32>, vector<2x384xf32> -> vector<2x384xf32>
    %78 = vector.extract_strided_slice %76 {offsets = [0, 0], sizes = [2, 256], strides = [1, 1]} : vector<2x384xf32> to vector<2x256xf32>
    %79 = vector.extract_strided_slice %77 {offsets = [0, 0], sizes = [2, 256], strides = [1, 1]} : vector<2x384xf32> to vector<2x256xf32>
    %80 = arith.addf %78, %79 : vector<2x256xf32>
    %81 = arith.negf %80 : vector<2x256xf32>
    %82 = math.exp %81 : vector<2x256xf32>
    %cst_29 = arith.constant 1.000000e+00 : f32
    %83 = vector.broadcast %cst_29 : f32 to vector<2x256xf32>
    %84 = arith.addf %83, %82 : vector<2x256xf32>
    %85 = arith.divf %83, %84 : vector<2x256xf32>
    %86 = vector.extract_strided_slice %85 {offsets = [0, 0], sizes = [2, 128], strides = [1, 1]} : vector<2x256xf32> to vector<2x128xf32>
    %87 = vector.extract_strided_slice %85 {offsets = [0, 128], sizes = [2, 128], strides = [1, 1]} : vector<2x256xf32> to vector<2x128xf32>
    %88 = vector.extract_strided_slice %76 {offsets = [0, 256], sizes = [2, 128], strides = [1, 1]} : vector<2x384xf32> to vector<2x128xf32>
    %89 = vector.extract_strided_slice %77 {offsets = [0, 256], sizes = [2, 128], strides = [1, 1]} : vector<2x384xf32> to vector<2x128xf32>
    %90 = vector.broadcast %4 : vector<1x128xf32> to vector<2x128xf32>
    %91 = arith.addf %89, %90 : vector<2x128xf32>
    %92 = arith.mulf %86, %91 : vector<2x128xf32>
    %93 = arith.addf %88, %92 : vector<2x128xf32>
    %94 = math.tanh %93 : vector<2x128xf32>
    %cst_30 = arith.constant 1.000000e+00 : f32
    %95 = vector.broadcast %cst_30 : f32 to vector<2x128xf32>
    %96 = arith.subf %95, %87 : vector<2x128xf32>
    %97 = arith.mulf %96, %94 : vector<2x128xf32>
    %98 = arith.mulf %87, %66 : vector<2x128xf32>
    %99 = arith.addf %97, %98 : vector<2x128xf32>
    %cst_31 = arith.constant dense<0.000000e+00> : vector<2x32xf32>
    %100 = tpu.matmul %99, %5, %cst_31 {dimension_numbers = #tpu.dot_dimension_numbers<[1], [0], [0], [1], [0, 0, 1, 1], [], []>} : vector<2x128xf32>, vector<128x32xf32>, vector<2x32xf32> -> vector<2x32xf32>
    %101 = vector.broadcast %6 : vector<1x32xf32> to vector<2x32xf32>
    %102 = arith.addf %100, %101 : vector<2x32xf32>
    %103 = arith.index_cast %c2_i32 : i32 to index
    %c0_32 = arith.constant 0 : index
    %c0_33 = arith.constant 0 : index
    %104 = vector.load %arg7[%103, %c0_32, %c0_33] : memref<8x2x32xf32, #tpu.memory_space<vmem>>, vector<1x2x32xf32>
    %105 = vector.shape_cast %104 : vector<1x2x32xf32> to vector<2x32xf32>
    %106 = vector.shape_cast %102 : vector<2x32xf32> to vector<1x2x32xf32>
    tpu.vector_store %arg7[%103, %c0_32, %c0_33], %106 {strides = array<i32>} : memref<8x2x32xf32, #tpu.memory_space<vmem>>, vector<1x2x32xf32>,
    %c3_i32 = arith.constant 3 : i32
    %107 = arith.index_cast %c3_i32 : i32 to index
    %c0_34 = arith.constant 0 : index
    %c0_35 = arith.constant 0 : index
    %108 = vector.load %arg1[%107, %c0_34, %c0_35] : memref<8x2x384xf32, #tpu.memory_space<vmem>>, vector<1x2x384xf32>
    %109 = vector.shape_cast %108 : vector<1x2x384xf32> to vector<2x384xf32>
    %cst_36 = arith.constant dense<0.000000e+00> : vector<2x384xf32>
    %110 = tpu.matmul %99, %3, %cst_36 {dimension_numbers = #tpu.dot_dimension_numbers<[1], [0], [0], [1], [0, 0, 1, 1], [], []>} : vector<2x128xf32>, vector<128x384xf32>, vector<2x384xf32> -> vector<2x384xf32>
    %111 = vector.extract_strided_slice %109 {offsets = [0, 0], sizes = [2, 256], strides = [1, 1]} : vector<2x384xf32> to vector<2x256xf32>
    %112 = vector.extract_strided_slice %110 {offsets = [0, 0], sizes = [2, 256], strides = [1, 1]} : vector<2x384xf32> to vector<2x256xf32>
    %113 = arith.addf %111, %112 : vector<2x256xf32>
    %114 = arith.negf %113 : vector<2x256xf32>
    %115 = math.exp %114 : vector<2x256xf32>
    %cst_37 = arith.constant 1.000000e+00 : f32
    %116 = vector.broadcast %cst_37 : f32 to vector<2x256xf32>
    %117 = arith.addf %116, %115 : vector<2x256xf32>
    %118 = arith.divf %116, %117 : vector<2x256xf32>
    %119 = vector.extract_strided_slice %118 {offsets = [0, 0], sizes = [2, 128], strides = [1, 1]} : vector<2x256xf32> to vector<2x128xf32>
    %120 = vector.extract_strided_slice %118 {offsets = [0, 128], sizes = [2, 128], strides = [1, 1]} : vector<2x256xf32> to vector<2x128xf32>
    %121 = vector.extract_strided_slice %109 {offsets = [0, 256], sizes = [2, 128], strides = [1, 1]} : vector<2x384xf32> to vector<2x128xf32>
    %122 = vector.extract_strided_slice %110 {offsets = [0, 256], sizes = [2, 128], strides = [1, 1]} : vector<2x384xf32> to vector<2x128xf32>
    %123 = vector.broadcast %4 : vector<1x128xf32> to vector<2x128xf32>
    %124 = arith.addf %122, %123 : vector<2x128xf32>
    %125 = arith.mulf %119, %124 : vector<2x128xf32>
    %126 = arith.addf %121, %125 : vector<2x128xf32>
    %127 = math.tanh %126 : vector<2x128xf32>
    %cst_38 = arith.constant 1.000000e+00 : f32
    %128 = vector.broadcast %cst_38 : f32 to vector<2x128xf32>
    %129 = arith.subf %128, %120 : vector<2x128xf32>
    %130 = arith.mulf %129, %127 : vector<2x128xf32>
    %131 = arith.mulf %120, %99 : vector<2x128xf32>
    %132 = arith.addf %130, %131 : vector<2x128xf32>
    %cst_39 = arith.constant dense<0.000000e+00> : vector<2x32xf32>
    %133 = tpu.matmul %132, %5, %cst_39 {dimension_numbers = #tpu.dot_dimension_numbers<[1], [0], [0], [1], [0, 0, 1, 1], [], []>} : vector<2x128xf32>, vector<128x32xf32>, vector<2x32xf32> -> vector<2x32xf32>
    %134 = vector.broadcast %6 : vector<1x32xf32> to vector<2x32xf32>
    %135 = arith.addf %133, %134 : vector<2x32xf32>
    %136 = arith.index_cast %c3_i32 : i32 to index
    %c0_40 = arith.constant 0 : index
    %c0_41 = arith.constant 0 : index
    %137 = vector.load %arg7[%136, %c0_40, %c0_41] : memref<8x2x32xf32, #tpu.memory_space<vmem>>, vector<1x2x32xf32>
    %138 = vector.shape_cast %137 : vector<1x2x32xf32> to vector<2x32xf32>
    %139 = vector.shape_cast %135 : vector<2x32xf32> to vector<1x2x32xf32>
    tpu.vector_store %arg7[%136, %c0_40, %c0_41], %139 {strides = array<i32>} : memref<8x2x32xf32, #tpu.memory_space<vmem>>, vector<1x2x32xf32>,
    %c4_i32 = arith.constant 4 : i32
    %140 = arith.index_cast %c4_i32 : i32 to index
    %c0_42 = arith.constant 0 : index
    %c0_43 = arith.constant 0 : index
    %141 = vector.load %arg1[%140, %c0_42, %c0_43] : memref<8x2x384xf32, #tpu.memory_space<vmem>>, vector<1x2x384xf32>
    %142 = vector.shape_cast %141 : vector<1x2x384xf32> to vector<2x384xf32>
    %cst_44 = arith.constant dense<0.000000e+00> : vector<2x384xf32>
    %143 = tpu.matmul %132, %3, %cst_44 {dimension_numbers = #tpu.dot_dimension_numbers<[1], [0], [0], [1], [0, 0, 1, 1], [], []>} : vector<2x128xf32>, vector<128x384xf32>, vector<2x384xf32> -> vector<2x384xf32>
    %144 = vector.extract_strided_slice %142 {offsets = [0, 0], sizes = [2, 256], strides = [1, 1]} : vector<2x384xf32> to vector<2x256xf32>
    %145 = vector.extract_strided_slice %143 {offsets = [0, 0], sizes = [2, 256], strides = [1, 1]} : vector<2x384xf32> to vector<2x256xf32>
    %146 = arith.addf %144, %145 : vector<2x256xf32>
    %147 = arith.negf %146 : vector<2x256xf32>
    %148 = math.exp %147 : vector<2x256xf32>
    %cst_45 = arith.constant 1.000000e+00 : f32
    %149 = vector.broadcast %cst_45 : f32 to vector<2x256xf32>
    %150 = arith.addf %149, %148 : vector<2x256xf32>
    %151 = arith.divf %149, %150 : vector<2x256xf32>
    %152 = vector.extract_strided_slice %151 {offsets = [0, 0], sizes = [2, 128], strides = [1, 1]} : vector<2x256xf32> to vector<2x128xf32>
    %153 = vector.extract_strided_slice %151 {offsets = [0, 128], sizes = [2, 128], strides = [1, 1]} : vector<2x256xf32> to vector<2x128xf32>
    %154 = vector.extract_strided_slice %142 {offsets = [0, 256], sizes = [2, 128], strides = [1, 1]} : vector<2x384xf32> to vector<2x128xf32>
    %155 = vector.extract_strided_slice %143 {offsets = [0, 256], sizes = [2, 128], strides = [1, 1]} : vector<2x384xf32> to vector<2x128xf32>
    %156 = vector.broadcast %4 : vector<1x128xf32> to vector<2x128xf32>
    %157 = arith.addf %155, %156 : vector<2x128xf32>
    %158 = arith.mulf %152, %157 : vector<2x128xf32>
    %159 = arith.addf %154, %158 : vector<2x128xf32>
    %160 = math.tanh %159 : vector<2x128xf32>
    %cst_46 = arith.constant 1.000000e+00 : f32
    %161 = vector.broadcast %cst_46 : f32 to vector<2x128xf32>
    %162 = arith.subf %161, %153 : vector<2x128xf32>
    %163 = arith.mulf %162, %160 : vector<2x128xf32>
    %164 = arith.mulf %153, %132 : vector<2x128xf32>
    %165 = arith.addf %163, %164 : vector<2x128xf32>
    %cst_47 = arith.constant dense<0.000000e+00> : vector<2x32xf32>
    %166 = tpu.matmul %165, %5, %cst_47 {dimension_numbers = #tpu.dot_dimension_numbers<[1], [0], [0], [1], [0, 0, 1, 1], [], []>} : vector<2x128xf32>, vector<128x32xf32>, vector<2x32xf32> -> vector<2x32xf32>
    %167 = vector.broadcast %6 : vector<1x32xf32> to vector<2x32xf32>
    %168 = arith.addf %166, %167 : vector<2x32xf32>
    %169 = arith.index_cast %c4_i32 : i32 to index
    %c0_48 = arith.constant 0 : index
    %c0_49 = arith.constant 0 : index
    %170 = vector.load %arg7[%169, %c0_48, %c0_49] : memref<8x2x32xf32, #tpu.memory_space<vmem>>, vector<1x2x32xf32>
    %171 = vector.shape_cast %170 : vector<1x2x32xf32> to vector<2x32xf32>
    %172 = vector.shape_cast %168 : vector<2x32xf32> to vector<1x2x32xf32>
    tpu.vector_store %arg7[%169, %c0_48, %c0_49], %172 {strides = array<i32>} : memref<8x2x32xf32, #tpu.memory_space<vmem>>, vector<1x2x32xf32>,
    %c5_i32 = arith.constant 5 : i32
    %173 = arith.index_cast %c5_i32 : i32 to index
    %c0_50 = arith.constant 0 : index
    %c0_51 = arith.constant 0 : index
    %174 = vector.load %arg1[%173, %c0_50, %c0_51] : memref<8x2x384xf32, #tpu.memory_space<vmem>>, vector<1x2x384xf32>
    %175 = vector.shape_cast %174 : vector<1x2x384xf32> to vector<2x384xf32>
    %cst_52 = arith.constant dense<0.000000e+00> : vector<2x384xf32>
    %176 = tpu.matmul %165, %3, %cst_52 {dimension_numbers = #tpu.dot_dimension_numbers<[1], [0], [0], [1], [0, 0, 1, 1], [], []>} : vector<2x128xf32>, vector<128x384xf32>, vector<2x384xf32> -> vector<2x384xf32>
    %177 = vector.extract_strided_slice %175 {offsets = [0, 0], sizes = [2, 256], strides = [1, 1]} : vector<2x384xf32> to vector<2x256xf32>
    %178 = vector.extract_strided_slice %176 {offsets = [0, 0], sizes = [2, 256], strides = [1, 1]} : vector<2x384xf32> to vector<2x256xf32>
    %179 = arith.addf %177, %178 : vector<2x256xf32>
    %180 = arith.negf %179 : vector<2x256xf32>
    %181 = math.exp %180 : vector<2x256xf32>
    %cst_53 = arith.constant 1.000000e+00 : f32
    %182 = vector.broadcast %cst_53 : f32 to vector<2x256xf32>
    %183 = arith.addf %182, %181 : vector<2x256xf32>
    %184 = arith.divf %182, %183 : vector<2x256xf32>
    %185 = vector.extract_strided_slice %184 {offsets = [0, 0], sizes = [2, 128], strides = [1, 1]} : vector<2x256xf32> to vector<2x128xf32>
    %186 = vector.extract_strided_slice %184 {offsets = [0, 128], sizes = [2, 128], strides = [1, 1]} : vector<2x256xf32> to vector<2x128xf32>
    %187 = vector.extract_strided_slice %175 {offsets = [0, 256], sizes = [2, 128], strides = [1, 1]} : vector<2x384xf32> to vector<2x128xf32>
    %188 = vector.extract_strided_slice %176 {offsets = [0, 256], sizes = [2, 128], strides = [1, 1]} : vector<2x384xf32> to vector<2x128xf32>
    %189 = vector.broadcast %4 : vector<1x128xf32> to vector<2x128xf32>
    %190 = arith.addf %188, %189 : vector<2x128xf32>
    %191 = arith.mulf %185, %190 : vector<2x128xf32>
    %192 = arith.addf %187, %191 : vector<2x128xf32>
    %193 = math.tanh %192 : vector<2x128xf32>
    %cst_54 = arith.constant 1.000000e+00 : f32
    %194 = vector.broadcast %cst_54 : f32 to vector<2x128xf32>
    %195 = arith.subf %194, %186 : vector<2x128xf32>
    %196 = arith.mulf %195, %193 : vector<2x128xf32>
    %197 = arith.mulf %186, %165 : vector<2x128xf32>
    %198 = arith.addf %196, %197 : vector<2x128xf32>
    %cst_55 = arith.constant dense<0.000000e+00> : vector<2x32xf32>
    %199 = tpu.matmul %198, %5, %cst_55 {dimension_numbers = #tpu.dot_dimension_numbers<[1], [0], [0], [1], [0, 0, 1, 1], [], []>} : vector<2x128xf32>, vector<128x32xf32>, vector<2x32xf32> -> vector<2x32xf32>
    %200 = vector.broadcast %6 : vector<1x32xf32> to vector<2x32xf32>
    %201 = arith.addf %199, %200 : vector<2x32xf32>
    %202 = arith.index_cast %c5_i32 : i32 to index
    %c0_56 = arith.constant 0 : index
    %c0_57 = arith.constant 0 : index
    %203 = vector.load %arg7[%202, %c0_56, %c0_57] : memref<8x2x32xf32, #tpu.memory_space<vmem>>, vector<1x2x32xf32>
    %204 = vector.shape_cast %203 : vector<1x2x32xf32> to vector<2x32xf32>
    %205 = vector.shape_cast %201 : vector<2x32xf32> to vector<1x2x32xf32>
    tpu.vector_store %arg7[%202, %c0_56, %c0_57], %205 {strides = array<i32>} : memref<8x2x32xf32, #tpu.memory_space<vmem>>, vector<1x2x32xf32>,
    %c6_i32 = arith.constant 6 : i32
    %206 = arith.index_cast %c6_i32 : i32 to index
    %c0_58 = arith.constant 0 : index
    %c0_59 = arith.constant 0 : index
    %207 = vector.load %arg1[%206, %c0_58, %c0_59] : memref<8x2x384xf32, #tpu.memory_space<vmem>>, vector<1x2x384xf32>
    %208 = vector.shape_cast %207 : vector<1x2x384xf32> to vector<2x384xf32>
    %cst_60 = arith.constant dense<0.000000e+00> : vector<2x384xf32>
    %209 = tpu.matmul %198, %3, %cst_60 {dimension_numbers = #tpu.dot_dimension_numbers<[1], [0], [0], [1], [0, 0, 1, 1], [], []>} : vector<2x128xf32>, vector<128x384xf32>, vector<2x384xf32> -> vector<2x384xf32>
    %210 = vector.extract_strided_slice %208 {offsets = [0, 0], sizes = [2, 256], strides = [1, 1]} : vector<2x384xf32> to vector<2x256xf32>
    %211 = vector.extract_strided_slice %209 {offsets = [0, 0], sizes = [2, 256], strides = [1, 1]} : vector<2x384xf32> to vector<2x256xf32>
    %212 = arith.addf %210, %211 : vector<2x256xf32>
    %213 = arith.negf %212 : vector<2x256xf32>
    %214 = math.exp %213 : vector<2x256xf32>
    %cst_61 = arith.constant 1.000000e+00 : f32
    %215 = vector.broadcast %cst_61 : f32 to vector<2x256xf32>
    %216 = arith.addf %215, %214 : vector<2x256xf32>
    %217 = arith.divf %215, %216 : vector<2x256xf32>
    %218 = vector.extract_strided_slice %217 {offsets = [0, 0], sizes = [2, 128], strides = [1, 1]} : vector<2x256xf32> to vector<2x128xf32>
    %219 = vector.extract_strided_slice %217 {offsets = [0, 128], sizes = [2, 128], strides = [1, 1]} : vector<2x256xf32> to vector<2x128xf32>
    %220 = vector.extract_strided_slice %208 {offsets = [0, 256], sizes = [2, 128], strides = [1, 1]} : vector<2x384xf32> to vector<2x128xf32>
    %221 = vector.extract_strided_slice %209 {offsets = [0, 256], sizes = [2, 128], strides = [1, 1]} : vector<2x384xf32> to vector<2x128xf32>
    %222 = vector.broadcast %4 : vector<1x128xf32> to vector<2x128xf32>
    %223 = arith.addf %221, %222 : vector<2x128xf32>
    %224 = arith.mulf %218, %223 : vector<2x128xf32>
    %225 = arith.addf %220, %224 : vector<2x128xf32>
    %226 = math.tanh %225 : vector<2x128xf32>
    %cst_62 = arith.constant 1.000000e+00 : f32
    %227 = vector.broadcast %cst_62 : f32 to vector<2x128xf32>
    %228 = arith.subf %227, %219 : vector<2x128xf32>
    %229 = arith.mulf %228, %226 : vector<2x128xf32>
    %230 = arith.mulf %219, %198 : vector<2x128xf32>
    %231 = arith.addf %229, %230 : vector<2x128xf32>
    %cst_63 = arith.constant dense<0.000000e+00> : vector<2x32xf32>
    %232 = tpu.matmul %231, %5, %cst_63 {dimension_numbers = #tpu.dot_dimension_numbers<[1], [0], [0], [1], [0, 0, 1, 1], [], []>} : vector<2x128xf32>, vector<128x32xf32>, vector<2x32xf32> -> vector<2x32xf32>
    %233 = vector.broadcast %6 : vector<1x32xf32> to vector<2x32xf32>
    %234 = arith.addf %232, %233 : vector<2x32xf32>
    %235 = arith.index_cast %c6_i32 : i32 to index
    %c0_64 = arith.constant 0 : index
    %c0_65 = arith.constant 0 : index
    %236 = vector.load %arg7[%235, %c0_64, %c0_65] : memref<8x2x32xf32, #tpu.memory_space<vmem>>, vector<1x2x32xf32>
    %237 = vector.shape_cast %236 : vector<1x2x32xf32> to vector<2x32xf32>
    %238 = vector.shape_cast %234 : vector<2x32xf32> to vector<1x2x32xf32>
    tpu.vector_store %arg7[%235, %c0_64, %c0_65], %238 {strides = array<i32>} : memref<8x2x32xf32, #tpu.memory_space<vmem>>, vector<1x2x32xf32>,
    %c7_i32 = arith.constant 7 : i32
    %239 = arith.index_cast %c7_i32 : i32 to index
    %c0_66 = arith.constant 0 : index
    %c0_67 = arith.constant 0 : index
    %240 = vector.load %arg1[%239, %c0_66, %c0_67] : memref<8x2x384xf32, #tpu.memory_space<vmem>>, vector<1x2x384xf32>
    %241 = vector.shape_cast %240 : vector<1x2x384xf32> to vector<2x384xf32>
    %cst_68 = arith.constant dense<0.000000e+00> : vector<2x384xf32>
    %242 = tpu.matmul %231, %3, %cst_68 {dimension_numbers = #tpu.dot_dimension_numbers<[1], [0], [0], [1], [0, 0, 1, 1], [], []>} : vector<2x128xf32>, vector<128x384xf32>, vector<2x384xf32> -> vector<2x384xf32>
    %243 = vector.extract_strided_slice %241 {offsets = [0, 0], sizes = [2, 256], strides = [1, 1]} : vector<2x384xf32> to vector<2x256xf32>
    %244 = vector.extract_strided_slice %242 {offsets = [0, 0], sizes = [2, 256], strides = [1, 1]} : vector<2x384xf32> to vector<2x256xf32>
    %245 = arith.addf %243, %244 : vector<2x256xf32>
    %246 = arith.negf %245 : vector<2x256xf32>
    %247 = math.exp %246 : vector<2x256xf32>
    %cst_69 = arith.constant 1.000000e+00 : f32
    %248 = vector.broadcast %cst_69 : f32 to vector<2x256xf32>
    %249 = arith.addf %248, %247 : vector<2x256xf32>
    %250 = arith.divf %248, %249 : vector<2x256xf32>
    %251 = vector.extract_strided_slice %250 {offsets = [0, 0], sizes = [2, 128], strides = [1, 1]} : vector<2x256xf32> to vector<2x128xf32>
    %252 = vector.extract_strided_slice %250 {offsets = [0, 128], sizes = [2, 128], strides = [1, 1]} : vector<2x256xf32> to vector<2x128xf32>
    %253 = vector.extract_strided_slice %241 {offsets = [0, 256], sizes = [2, 128], strides = [1, 1]} : vector<2x384xf32> to vector<2x128xf32>
    %254 = vector.extract_strided_slice %242 {offsets = [0, 256], sizes = [2, 128], strides = [1, 1]} : vector<2x384xf32> to vector<2x128xf32>
    %255 = vector.broadcast %4 : vector<1x128xf32> to vector<2x128xf32>
    %256 = arith.addf %254, %255 : vector<2x128xf32>
    %257 = arith.mulf %251, %256 : vector<2x128xf32>
    %258 = arith.addf %253, %257 : vector<2x128xf32>
    %259 = math.tanh %258 : vector<2x128xf32>
    %cst_70 = arith.constant 1.000000e+00 : f32
    %260 = vector.broadcast %cst_70 : f32 to vector<2x128xf32>
    %261 = arith.subf %260, %252 : vector<2x128xf32>
    %262 = arith.mulf %261, %259 : vector<2x128xf32>
    %263 = arith.mulf %252, %231 : vector<2x128xf32>
    %264 = arith.addf %262, %263 : vector<2x128xf32>
    %cst_71 = arith.constant dense<0.000000e+00> : vector<2x32xf32>
    %265 = tpu.matmul %264, %5, %cst_71 {dimension_numbers = #tpu.dot_dimension_numbers<[1], [0], [0], [1], [0, 0, 1, 1], [], []>} : vector<2x128xf32>, vector<128x32xf32>, vector<2x32xf32> -> vector<2x32xf32>
    %266 = vector.broadcast %6 : vector<1x32xf32> to vector<2x32xf32>
    %267 = arith.addf %265, %266 : vector<2x32xf32>
    %268 = arith.index_cast %c7_i32 : i32 to index
    %c0_72 = arith.constant 0 : index
    %c0_73 = arith.constant 0 : index
    %269 = vector.load %arg7[%268, %c0_72, %c0_73] : memref<8x2x32xf32, #tpu.memory_space<vmem>>, vector<1x2x32xf32>
    %270 = vector.shape_cast %269 : vector<1x2x32xf32> to vector<2x32xf32>
    %271 = vector.shape_cast %267 : vector<2x32xf32> to vector<1x2x32xf32>
    tpu.vector_store %arg7[%268, %c0_72, %c0_73], %271 {strides = array<i32>} : memref<8x2x32xf32, #tpu.memory_space<vmem>>, vector<1x2x32xf32>,
    %c8_i32 = arith.constant 8 : i32
    %c0_74 = arith.constant 0 : index
    %c0_75 = arith.constant 0 : index
    %272 = vector.load %arg8[%c0_74, %c0_75] : memref<2x128xf32, #tpu.memory_space<vmem>>, vector<2x128xf32>
    tpu.vector_store %arg8[%c0_74, %c0_75], %264 {strides = array<i32>} : memref<2x128xf32, #tpu.memory_space<vmem>>, vector<2x128xf32>,
    return
  }
  func.func @transform_0(%arg0: i32) -> (i32, i32, i32) {
    %c0_i32 = arith.constant 0 : i32
    %c0_i32_0 = arith.constant 0 : i32
    %c0_i32_1 = arith.constant 0 : i32
    return %arg0, %c0_i32, %c0_i32_0 : i32, i32, i32
  }
  func.func @transform_1(%arg0: i32) -> (i32, i32) {
    %c0_i32 = arith.constant 0 : i32
    %c0_i32_0 = arith.constant 0 : i32
    %c0_i32_1 = arith.constant 0 : i32
    return %c0_i32, %c0_i32_0 : i32, i32
  }
  func.func @transform_2(%arg0: i32) -> (i32, i32) {
    %c0_i32 = arith.constant 0 : i32
    %c0_i32_0 = arith.constant 0 : i32
    %c0_i32_1 = arith.constant 0 : i32
    return %c0_i32, %c0_i32_0 : i32, i32
  }
  func.func @transform_3(%arg0: i32) -> (i32, i32) {
    %c0_i32 = arith.constant 0 : i32
    %c0_i32_0 = arith.constant 0 : i32
    %c0_i32_1 = arith.constant 0 : i32
    return %c0_i32, %c0_i32_0 : i32, i32
  }
  func.func @transform_4(%arg0: i32) -> (i32, i32) {
    %c0_i32 = arith.constant 0 : i32
    %c0_i32_0 = arith.constant 0 : i32
    %c0_i32_1 = arith.constant 0 : i32
    return %c0_i32, %c0_i32_0 : i32, i32
  }
  func.func @transform_5(%arg0: i32) -> (i32, i32) {
    %c0_i32 = arith.constant 0 : i32
    %c0_i32_0 = arith.constant 0 : i32
    %c0_i32_1 = arith.constant 0 : i32
    return %c0_i32, %c0_i32_0 : i32, i32
  }
  func.func @transform_6(%arg0: i32) -> (i32, i32, i32) {
    %c0_i32 = arith.constant 0 : i32
    %c0_i32_0 = arith.constant 0 : i32
    %c0_i32_1 = arith.constant 0 : i32
    return %arg0, %c0_i32, %c0_i32_0 : i32, i32, i32
  }
  func.func @transform_7(%arg0: i32) -> (i32, i32) {
    %c0_i32 = arith.constant 0 : i32
    %c0_i32_0 = arith.constant 0 : i32
    %c0_i32_1 = arith.constant 0 : i32
    return %c0_i32, %c0_i32_0 : i32, i32
  }
}

</mosaic_0001>

<llo_original>
// kernel: gru_forward.1
$region0: #{gru_forward.1}
  #allocation0 [shape = 'u32[]', space=smem, size = 0x4, offset = 0x4, fixed_abs, tag = 'smem constant byte address 0x4 - core index']
  #allocation1 [shape = 'u32[144,128]{1,0:T(1,128)}', space=vmem, size = 0x12000, scoped, tag = 'internal scratch']
  %s0 = inlined_call_operand.vmem [shape: f32[8,2,384], index: 0, kind: input, shape index: {}]
  %s1 = inlined_call_operand.vmem [shape: f32[2,128], index: 1, kind: input, shape index: {}]
  %s2 = inlined_call_operand.vmem [shape: f32[128,384], index: 2, kind: input, shape index: {}]
  %s3 = inlined_call_operand.vmem [shape: f32[1,128], index: 3, kind: input, shape index: {}]
  %s4 = inlined_call_operand.vmem [shape: f32[128,32], index: 4, kind: input, shape index: {}]
  %s5 = inlined_call_operand.vmem [shape: f32[1,32], index: 5, kind: input, shape index: {}]
  %s6 = inlined_call_operand.vmem [shape: f32[8,2,32], index: 6, kind: output, shape index: {0}]
  %s7 = inlined_call_operand.vmem [shape: f32[2,128], index: 7, kind: output, shape index: {1}]
  %8 = xla_tuple %s6, %s7
  %s9 = sld [smem:[#allocation0]]
  $region46: #{gru_forward.1} parent=0
    _
  %s11 = ssub.s32 1, %s9
  %s12 = scalar_select 0, %s11, %s9
  // Predicated region
  $region2: #{gru_forward.1} parent=0 // pred_check
    _
  $region3: #{gru_forward.1} parent=0 // pred_check_branch
    %14 = sbr.rel (0) target = $region5
  $region4: #{gru_forward.1} parent=0 // pred_region
    _
  $region5: #{gru_forward.1} parent=0 // pred_fallthru
    _
  // Predicated region
  $region6: #{gru_forward.1} parent=0 // pred_check
    _
  $region7: #{gru_forward.1} parent=0 // pred_check_branch
    %16 = sbr.rel (0) target = $region9
  $region8: #{gru_forward.1} parent=0 // pred_region
    _
  $region9: #{gru_forward.1} parent=0 // pred_fallthru
    _
  // Predicated region
  $region10: #{gru_forward.1} parent=0 // pred_check
    _
  $region11: #{gru_forward.1} parent=0 // pred_check_branch
    %18 = sbr.rel (0) target = $region13
  $region12: #{gru_forward.1} parent=0 // pred_region
    _
  $region13: #{gru_forward.1} parent=0 // pred_fallthru
    _
  // Predicated region
  $region14: #{gru_forward.1} parent=0 // pred_check
    _
  $region15: #{gru_forward.1} parent=0 // pred_check_branch
    %20 = sbr.rel (0) target = $region17
  $region16: #{gru_forward.1} parent=0 // pred_region
    _
  $region17: #{gru_forward.1} parent=0 // pred_fallthru
    _
  // Predicated region
  $region18: #{gru_forward.1} parent=0 // pred_check
    _
  $region19: #{gru_forward.1} parent=0 // pred_check_branch
    %22 = sbr.rel (0) target = $region21
  $region20: #{gru_forward.1} parent=0 // pred_region
    _
  $region21: #{gru_forward.1} parent=0 // pred_fallthru
    _
  // Predicated region
  $region22: #{gru_forward.1} parent=0 // pred_check
    _
  $region23: #{gru_forward.1} parent=0 // pred_check_branch
    %24 = sbr.rel (0) target = $region25
  $region24: #{gru_forward.1} parent=0 // pred_region
    _
  $region25: #{gru_forward.1} parent=0 // pred_fallthru
    _
  %p25 = scmp.eq.s32.totalorder 0, 0
  // Predicated region
  $region26: #{gru_forward.1} parent=0 // pred_check
    %p26 = pneg %p25
  $region27: #{gru_forward.1} parent=0 // pred_check_branch
    %28 = sbr.rel (%p26) target = $region29
  $region28: #{gru_forward.1} parent=0 // pred_region
    %v29 = vld [vmem:[%s1] sm:$0x3]
    %30 = vst [vmem:[%s7] sm:$0x3] %v29
  $region29: #{gru_forward.1} parent=0 // pred_fallthru
    _
  %v31 = vld [vmem:[%s2] sm:$0xff]
  %v32 = vld [vmem:[%s2 + $0x8] sm:$0xff]
  %v33 = vld [vmem:[%s2 + $0x10] sm:$0xff]
  %v34 = vld [vmem:[%s2 + $0x18] sm:$0xff]
  %v35 = vld [vmem:[%s2 + $0x20] sm:$0xff]
  %v36 = vld [vmem:[%s2 + $0x28] sm:$0xff]
  %v37 = vld [vmem:[%s2 + $0x30] sm:$0xff]
  %v38 = vld [vmem:[%s2 + $0x38] sm:$0xff]
  %v39 = vld [vmem:[%s2 + $0x40] sm:$0xff]
  %v40 = vld [vmem:[%s2 + $0x48] sm:$0xff]
  %v41 = vld [vmem:[%s2 + $0x50] sm:$0xff]
  %v42 = vld [vmem:[%s2 + $0x58] sm:$0xff]
  %v43 = vld [vmem:[%s2 + $0x60] sm:$0xff]
  %v44 = vld [vmem:[%s2 + $0x68] sm:$0xff]
  %v45 = vld [vmem:[%s2 + $0x70] sm:$0xff]
  %v46 = vld [vmem:[%s2 + $0x78] sm:$0xff]
  %v47 = vld [vmem:[%s2 + $0x80] sm:$0xff]
  %v48 = vld [vmem:[%s2 + $0x88] sm:$0xff]
  %v49 = vld [vmem:[%s2 + $0x90] sm:$0xff]
  %v50 = vld [vmem:[%s2 + $0x98] sm:$0xff]
  %v51 = vld [vmem:[%s2 + $0xa0] sm:$0xff]
  %v52 = vld [vmem:[%s2 + $0xa8] sm:$0xff]
  %v53 = vld [vmem:[%s2 + $0xb0] sm:$0xff]
  %v54 = vld [vmem:[%s2 + $0xb8] sm:$0xff]
  %v55 = vld [vmem:[%s2 + $0xc0] sm:$0xff]
  %v56 = vld [vmem:[%s2 + $0xc8] sm:$0xff]
  %v57 = vld [vmem:[%s2 + $0xd0] sm:$0xff]
  %v58 = vld [vmem:[%s2 + $0xd8] sm:$0xff]
  %v59 = vld [vmem:[%s2 + $0xe0] sm:$0xff]
  %v60 = vld [vmem:[%s2 + $0xe8] sm:$0xff]
  %v61 = vld [vmem:[%s2 + $0xf0] sm:$0xff]
  %v62 = vld [vmem:[%s2 + $0xf8] sm:$0xff]
  %v63 = vld [vmem:[%s2 + $0x100] sm:$0xff]
  %v64 = vld [vmem:[%s2 + $0x108] sm:$0xff]
  %v65 = vld [vmem:[%s2 + $0x110] sm:$0xff]
  %v66 = vld [vmem:[%s2 + $0x118] sm:$0xff]
  %v67 = vld [vmem:[%s2 + $0x120] sm:$0xff]
  %v68 = vld [vmem:[%s2 + $0x128] sm:$0xff]
  %v69 = vld [vmem:[%s2 + $0x130] sm:$0xff]
  %v70 = vld [vmem:[%s2 + $0x138] sm:$0xff]
  %v71 = vld [vmem:[%s2 + $0x140] sm:$0xff]
  %v72 = vld [vmem:[%s2 + $0x148] sm:$0xff]
  %v73 = vld [vmem:[%s2 + $0x150] sm:$0xff]
  %v74 = vld [vmem:[%s2 + $0x158] sm:$0xff]
  %v75 = vld [vmem:[%s2 + $0x160] sm:$0xff]
  %v76 = vld [vmem:[%s2 + $0x168] sm:$0xff]
  %v77 = vld [vmem:[%s2 + $0x170] sm:$0xff]
  %v78 = vld [vmem:[%s2 + $0x178] sm:$0xff]
  %v79 = vld [vmem:[%s3] sm:$0x1]
  %v80 = vld [vmem:[%s4] sm:$0xff]
  %v81 = vld [vmem:[%s4 + $0x8] sm:$0xff]
  %v82 = vld [vmem:[%s4 + $0x10] sm:$0xff]
  %v83 = vld [vmem:[%s4 + $0x18] sm:$0xff]
  %v84 = vld [vmem:[%s4 + $0x20] sm:$0xff]
  %v85 = vld [vmem:[%s4 + $0x28] sm:$0xff]
  %v86 = vld [vmem:[%s4 + $0x30] sm:$0xff]
  %v87 = vld [vmem:[%s4 + $0x38] sm:$0xff]
  %v88 = vld [vmem:[%s4 + $0x40] sm:$0xff]
  %v89 = vld [vmem:[%s4 + $0x48] sm:$0xff]
  %v90 = vld [vmem:[%s4 + $0x50] sm:$0xff]
  %v91 = vld [vmem:[%s4 + $0x58] sm:$0xff]
  %v92 = vld [vmem:[%s4 + $0x60] sm:$0xff]
  %v93 = vld [vmem:[%s4 + $0x68] sm:$0xff]
  %v94 = vld [vmem:[%s4 + $0x70] sm:$0xff]
  %v95 = vld [vmem:[%s4 + $0x78] sm:$0xff]
  %v96 = vld [vmem:[%s5] sm:$0x1]
  %v97 = vld [vmem:[%s7] sm:$0x3]
  %v98 = vld [vmem:[%s0] sm:$0x3f]
  %99 = vmatprep.subr.mxu0 %v32
  %100 = vmatpush1.msra.mxu0 %v31
  %101 = vmatprep.subr.mxu0 %v35
  %102 = vmatpush1.msra.mxu0 %v34
  %103 = vmatprep.subr.mxu0 %v38
  %104 = vmatpush1.msra.mxu0 %v37
  %105 = vmatprep.subr.mxu0 %v41
  %106 = vmatpush1.msra.mxu0 %v40
  %107 = vmatprep.subr.mxu0 %v44
  %108 = vmatpush1.msra.mxu0 %v43
  %109 = vmatprep.subr.mxu0 %v47
  %110 = vmatpush1.msra.mxu0 %v46
  %111 = vmatprep.subr.mxu0 %v50
  %112 = vmatpush1.msra.mxu0 %v49
  %113 = vmatprep.subr.mxu0 %v53
  %114 = vmatpush1.msra.mxu0 %v52
  %115 = vmatprep.subr.mxu0 %v56
  %116 = vmatpush1.msra.mxu0 %v55
  %117 = vmatprep.subr.mxu0 %v59
  %118 = vmatpush1.msra.mxu0 %v58
  %119 = vmatprep.subr.mxu0 %v62
  %120 = vmatpush1.msra.mxu0 %v61
  %121 = vmatprep.subr.mxu0 %v65
  %122 = vmatpush1.msra.mxu0 %v64
  %123 = vmatprep.subr.mxu0 %v68
  %124 = vmatpush1.msra.mxu0 %v67
  %125 = vmatprep.subr.mxu0 %v71
  %126 = vmatpush1.msra.mxu0 %v70
  %127 = vmatprep.subr.mxu0 %v74
  %128 = vmatpush1.msra.mxu0 %v73
  %129 = vmatprep.subr.mxu0 %v77
  %130 = vmatpush1.msra.mxu0 %v76
  %131 = vmatprep.subr.mxu0 0.0
  %132 = vmatpush1.msra.mxu0 0.0
  %133 = vmatprep.subr.mxu0 0.0
  %134 = vmatpush1.msra.mxu0 0.0
  %135 = vmatprep.subr.mxu0 0.0
  %136 = vmatpush1.msra.mxu0 0.0
  %137 = vmatprep.subr.mxu0 0.0
  %138 = vmatpush1.msra.mxu0 0.0
  %139 = vmatprep.subr.mxu0 0.0
  %140 = vmatpush1.msra.mxu0 0.0
  %141 = vmatprep.subr.mxu0 0.0
  %142 = vmatpush1.msra.mxu0 0.0
  %143 = vmatprep.subr.mxu0 0.0
  %144 = vmatpush1.msra.mxu0 0.0
  %145 = vmatprep.subr.mxu0 0.0
  %146 = vmatpush1.msra.mxu0 0.0
  %147 = vmatprep.subr.mxu0 0.0
  %148 = vmatpush1.msra.mxu0 0.0
  %149 = vmatprep.subr.mxu0 0.0
  %150 = vmatpush1.msra.mxu0 0.0
  %151 = vmatprep.subr.mxu0 0.0
  %152 = vmatpush1.msra.mxu0 0.0
  %153 = vmatprep.subr.mxu0 0.0
  %154 = vmatpush1.msra.mxu0 0.0
  %155 = vmatprep.subr.mxu0 0.0
  %156 = vmatpush1.msra.mxu0 0.0
  %157 = vmatprep.subr.mxu0 0.0
  %158 = vmatpush1.msra.mxu0 0.0
  %159 = vmatprep.subr.mxu0 0.0
  %160 = vmatpush1.msra.mxu0 0.0
  %161 = vmatprep.subr.mxu0 0.0
  %162 = vmatpush1.msra.mxu0 0.0
  %163 = vmatprep.mubr.f32.mxu0 0.0
  %164 = vmatmul.mubr.f32.gmra.mrb[0].mxu0 %v97
  %v165 = vpop.f32.mrb[0].mxu0
  %v166 = vadd.f32 0.0, %v165
  %v167 = vpop.f32.mrb[0].mxu0
  %v168 = vadd.f32 0.0, %v167
  %169 = vdwg.mxu0
  %170 = vmatprep.subr.mxu0 0.0
  %171 = vmatpush1.msra.mxu0 %v33
  %172 = vmatprep.subr.mxu0 0.0
  %173 = vmatpush1.msra.mxu0 %v36
  %174 = vmatprep.subr.mxu0 0.0
  %175 = vmatpush1.msra.mxu0 %v39
  %176 = vmatprep.subr.mxu0 0.0
  %177 = vmatpush1.msra.mxu0 %v42
  %178 = vmatprep.subr.mxu0 0.0
  %179 = vmatpush1.msra.mxu0 %v45
  %180 = vmatprep.subr.mxu0 0.0
  %181 = vmatpush1.msra.mxu0 %v48
  %182 = vmatprep.subr.mxu0 0.0
  %183 = vmatpush1.msra.mxu0 %v51
  %184 = vmatprep.subr.mxu0 0.0
  %185 = vmatpush1.msra.mxu0 %v54
  %186 = vmatprep.subr.mxu0 0.0
  %187 = vmatpush1.msra.mxu0 %v57
  %188 = vmatprep.subr.mxu0 0.0
  %189 = vmatpush1.msra.mxu0 %v60
  %190 = vmatprep.subr.mxu0 0.0
  %191 = vmatpush1.msra.mxu0 %v63
  %192 = vmatprep.subr.mxu0 0.0
  %193 = vmatpush1.msra.mxu0 %v66
  %194 = vmatprep.subr.mxu0 0.0
  %195 = vmatpush1.msra.mxu0 %v69
  %196 = vmatprep.subr.mxu0 0.0
  %197 = vmatpush1.msra.mxu0 %v72
  %198 = vmatprep.subr.mxu0 0.0
  %199 = vmatpush1.msra.mxu0 %v75
  %200 = vmatprep.subr.mxu0 0.0
  %201 = vmatpush1.msra.mxu0 %v78
  %202 = vmatprep.subr.mxu0 0.0
  %203 = vmatpush1.msra.mxu0 0.0
  %204 = vmatprep.subr.mxu0 0.0
  %205 = vmatpush1.msra.mxu0 0.0
  %206 = vmatprep.subr.mxu0 0.0
  %207 = vmatpush1.msra.mxu0 0.0
  %208 = vmatprep.subr.mxu0 0.0
  %209 = vmatpush1.msra.mxu0 0.0
  %210 = vmatprep.subr.mxu0 0.0
  %211 = vmatpush1.msra.mxu0 0.0
  %212 = vmatprep.subr.mxu0 0.0
  %213 = vmatpush1.msra.mxu0 0.0
  %214 = vmatprep.subr.mxu0 0.0
  %215 = vmatpush1.msra.mxu0 0.0
  %216 = vmatprep.subr.mxu0 0.0
  %217 = vmatpush1.msra.mxu0 0.0
  %218 = vmatprep.subr.mxu0 0.0
  %219 = vmatpush1.msra.mxu0 0.0
  %220 = vmatprep.subr.mxu0 0.0
  %221 = vmatpush1.msra.mxu0 0.0
  %222 = vmatprep.subr.mxu0 0.0
  %223 = vmatpush1.msra.mxu0 0.0
  %224 = vmatprep.subr.mxu0 0.0
  %225 = vmatpush1.msra.mxu0 0.0
  %226 = vmatprep.subr.mxu0 0.0
  %227 = vmatpush1.msra.mxu0 0.0
  %228 = vmatprep.subr.mxu0 0.0
  %229 = vmatpush1.msra.mxu0 0.0
  %230 = vmatprep.subr.mxu0 0.0
  %231 = vmatpush1.msra.mxu0 0.0
  %232 = vmatprep.subr.mxu0 0.0
  %233 = vmatpush1.msra.mxu0 0.0
  %234 = vmatprep.mubr.f32.mxu0 0.0
  %235 = vmatmul.mubr.f32.gmra.mrb[0].mxu0 %v97
  %v236 = vpop.f32.mrb[0].mxu0
  %v237 = vadd.f32 0.0, %v236
  %v238 = vpop.f32.mrb[0].mxu0
  %239 = vdwg.mxu0
  %v242 = vcombine.low %v166, %v168
  %v244 = vunpack.c.l.s4 1983009808
  %v245 = vunpack.c.0.s8 %v244
  %v246 = vlaneseq
  %v247 = vshrl.u32 %v246, 7
  %v248 = vsub.s32 %v245, %v247
  %v249 = vrot.slane %v242, %v248
  %v251 = vadd.f32 %v98, %v249
  %v252 = vxor.u32 %v251, 2147483648
  %v253 = vmul.f32 %v252, 1.442695
  %v254 = vpow.pop %v253
  %v255 = vadd.f32 %v254, 1.0
  %v256 = vrcp.pop %v255
  %v257 = vmul.f32 1.0, %v256
  %v259 = vlaneseq
  %v260 = vshrl.u32 %v259, 7
  %v261 = vsub.s32 0, %v260
  %v262 = vrot.slane %v79, %v261
  %v264 = vadd.f32 %v237, %v262
  %v265 = vmul.f32 %v257, %v264
  %v267 = vrot.slane %v98, 4
  %v269 = vadd.f32 %v267, %v265
  %v270 = vtanh.pop %v269
  %v272 = vrot.slane %v257, 2
  %v274 = vsub.f32 1.0, %v272
  %v275 = vmul.f32 %v274, %v270
  %v276 = vmul.f32 %v272, %v97
  %v277 = vadd.f32 %v275, %v276
  %v279 = vlaneseq
  %v280 = vshrl.u32 %v279, 7
  %v281 = vsub.s32 0, %v280
  %v282 = vrot.slane %v96, %v281
  %284 = vmatprep.subr.mxu0 0.0
  %285 = vmatpush1.msra.mxu0 %v80
  %286 = vmatprep.subr.mxu0 0.0
  %287 = vmatpush1.msra.mxu0 %v81
  %288 = vmatprep.subr.mxu0 0.0
  %289 = vmatpush1.msra.mxu0 %v82
  %290 = vmatprep.subr.mxu0 0.0
  %291 = vmatpush1.msra.mxu0 %v83
  %292 = vmatprep.subr.mxu0 0.0
  %293 = vmatpush1.msra.mxu0 %v84
  %294 = vmatprep.subr.mxu0 0.0
  %295 = vmatpush1.msra.mxu0 %v85
  %296 = vmatprep.subr.mxu0 0.0
  %297 = vmatpush1.msra.mxu0 %v86
  %298 = vmatprep.subr.mxu0 0.0
  %299 = vmatpush1.msra.mxu0 %v87
  %300 = vmatprep.subr.mxu0 0.0
  %301 = vmatpush1.msra.mxu0 %v88
  %302 = vmatprep.subr.mxu0 0.0
  %303 = vmatpush1.msra.mxu0 %v89
  %304 = vmatprep.subr.mxu0 0.0
  %305 = vmatpush1.msra.mxu0 %v90
  %306 = vmatprep.subr.mxu0 0.0
  %307 = vmatpush1.msra.mxu0 %v91
  %308 = vmatprep.subr.mxu0 0.0
  %309 = vmatpush1.msra.mxu0 %v92
  %310 = vmatprep.subr.mxu0 0.0
  %311 = vmatpush1.msra.mxu0 %v93
  %312 = vmatprep.subr.mxu0 0.0
  %313 = vmatpush1.msra.mxu0 %v94
  %314 = vmatprep.subr.mxu0 0.0
  %315 = vmatpush1.msra.mxu0 %v95
  %316 = vmatprep.subr.mxu0 0.0
  %317 = vmatpush1.msra.mxu0 0.0
  %318 = vmatprep.subr.mxu0 0.0
  %319 = vmatpush1.msra.mxu0 0.0
  %320 = vmatprep.subr.mxu0 0.0
  %321 = vmatpush1.msra.mxu0 0.0
  %322 = vmatprep.subr.mxu0 0.0
  %323 = vmatpush1.msra.mxu0 0.0
  %324 = vmatprep.subr.mxu0 0.0
  %325 = vmatpush1.msra.mxu0 0.0
  %326 = vmatprep.subr.mxu0 0.0
  %327 = vmatpush1.msra.mxu0 0.0
  %328 = vmatprep.subr.mxu0 0.0
  %329 = vmatpush1.msra.mxu0 0.0
  %330 = vmatprep.subr.mxu0 0.0
  %331 = vmatpush1.msra.mxu0 0.0
  %332 = vmatprep.subr.mxu0 0.0
  %333 = vmatpush1.msra.mxu0 0.0
  %334 = vmatprep.subr.mxu0 0.0
  %335 = vmatpush1.msra.mxu0 0.0
  %336 = vmatprep.subr.mxu0 0.0
  %337 = vmatpush1.msra.mxu0 0.0
  %338 = vmatprep.subr.mxu0 0.0
  %339 = vmatpush1.msra.mxu0 0.0
  %340 = vmatprep.subr.mxu0 0.0
  %341 = vmatpush1.msra.mxu0 0.0
  %342 = vmatprep.subr.mxu0 0.0
  %343 = vmatpush1.msra.mxu0 0.0
  %344 = vmatprep.subr.mxu0 0.0
  %345 = vmatpush1.msra.mxu0 0.0
  %346 = vmatprep.subr.mxu0 0.0
  %347 = vmatpush1.msra.mxu0 0.0
  %348 = vmatprep.mubr.f32.mxu0 0.0
  %349 = vmatmul.mubr.f32.gmra.mrb[0].mxu0 %v277
  %v350 = vpop.f32.mrb[0].mxu0
  %v351 = vadd.f32 %v282, %v350
  %v352 = vpop.f32.mrb[0].mxu0
  %353 = vdwg.mxu0
  %vm354 = vcmask 254976
  %355 = vst.msk [vmem:[%s6] sm:$0x3] %vm354, %v351
  %s356 = scalar_lea.vmem %s0, 6
  %v357 = vld [vmem:[%s356] sm:$0x3f]
  %358 = vmatprep.subr.mxu0 %v32
  %359 = vmatpush1.msra.mxu0 %v31
  %360 = vmatprep.subr.mxu0 %v35
  %361 = vmatpush1.msra.mxu0 %v34
  %362 = vmatprep.subr.mxu0 %v38
  %363 = vmatpush1.msra.mxu0 %v37
  %364 = vmatprep.subr.mxu0 %v41
  %365 = vmatpush1.msra.mxu0 %v40
  %366 = vmatprep.subr.mxu0 %v44
  %367 = vmatpush1.msra.mxu0 %v43
  %368 = vmatprep.subr.mxu0 %v47
  %369 = vmatpush1.msra.mxu0 %v46
  %370 = vmatprep.subr.mxu0 %v50
  %371 = vmatpush1.msra.mxu0 %v49
  %372 = vmatprep.subr.mxu0 %v53
  %373 = vmatpush1.msra.mxu0 %v52
  %374 = vmatprep.subr.mxu0 %v56
  %375 = vmatpush1.msra.mxu0 %v55
  %376 = vmatprep.subr.mxu0 %v59
  %377 = vmatpush1.msra.mxu0 %v58
  %378 = vmatprep.subr.mxu0 %v62
  %379 = vmatpush1.msra.mxu0 %v61
  %380 = vmatprep.subr.mxu0 %v65
  %381 = vmatpush1.msra.mxu0 %v64
  %382 = vmatprep.subr.mxu0 %v68
  %383 = vmatpush1.msra.mxu0 %v67
  %384 = vmatprep.subr.mxu0 %v71
  %385 = vmatpush1.msra.mxu0 %v70
  %386 = vmatprep.subr.mxu0 %v74
  %387 = vmatpush1.msra.mxu0 %v73
  %388 = vmatprep.subr.mxu0 %v77
  %389 = vmatpush1.msra.mxu0 %v76
  %390 = vmatprep.subr.mxu0 0.0
  %391 = vmatpush1.msra.mxu0 0.0
  %392 = vmatprep.subr.mxu0 0.0
  %393 = vmatpush1.msra.mxu0 0.0
  %394 = vmatprep.subr.mxu0 0.0
  %395 = vmatpush1.msra.mxu0 0.0
  %396 = vmatprep.subr.mxu0 0.0
  %397 = vmatpush1.msra.mxu0 0.0
  %398 = vmatprep.subr.mxu0 0.0
  %399 = vmatpush1.msra.mxu0 0.0
  %400 = vmatprep.subr.mxu0 0.0
  %401 = vmatpush1.msra.mxu0 0.0
  %402 = vmatprep.subr.mxu0 0.0
  %403 = vmatpush1.msra.mxu0 0.0
  %404 = vmatprep.subr.mxu0 0.0
  %405 = vmatpush1.msra.mxu0 0.0
  %406 = vmatprep.subr.mxu0 0.0
  %407 = vmatpush1.msra.mxu0 0.0
  %408 = vmatprep.subr.mxu0 0.0
  %409 = vmatpush1.msra.mxu0 0.0
  %410 = vmatprep.subr.mxu0 0.0
  %411 = vmatpush1.msra.mxu0 0.0
  %412 = vmatprep.subr.mxu0 0.0
  %413 = vmatpush1.msra.mxu0 0.0
  %414 = vmatprep.subr.mxu0 0.0
  %415 = vmatpush1.msra.mxu0 0.0
  %416 = vmatprep.subr.mxu0 0.0
  %417 = vmatpush1.msra.mxu0 0.0
  %418 = vmatprep.subr.mxu0 0.0
  %419 = vmatpush1.msra.mxu0 0.0
  %420 = vmatprep.subr.mxu0 0.0
  %421 = vmatpush1.msra.mxu0 0.0
  %422 = vmatprep.mubr.f32.mxu0 0.0
  %423 = vmatmul.mubr.f32.gmra.mrb[0].mxu0 %v277
  %v424 = vpop.f32.mrb[0].mxu0
  %v425 = vadd.f32 0.0, %v424
  %v426 = vpop.f32.mrb[0].mxu0
  %v427 = vadd.f32 0.0, %v426
  %428 = vdwg.mxu0
  %429 = vmatprep.subr.mxu0 0.0
  %430 = vmatpush1.msra.mxu0 %v33
  %431 = vmatprep.subr.mxu0 0.0
  %432 = vmatpush1.msra.mxu0 %v36
  %433 = vmatprep.subr.mxu0 0.0
  %434 = vmatpush1.msra.mxu0 %v39
  %435 = vmatprep.subr.mxu0 0.0
  %436 = vmatpush1.msra.mxu0 %v42
  %437 = vmatprep.subr.mxu0 0.0
  %438 = vmatpush1.msra.mxu0 %v45
  %439 = vmatprep.subr.mxu0 0.0
  %440 = vmatpush1.msra.mxu0 %v48
  %441 = vmatprep.subr.mxu0 0.0
  %442 = vmatpush1.msra.mxu0 %v51
  %443 = vmatprep.subr.mxu0 0.0
  %444 = vmatpush1.msra.mxu0 %v54
  %445 = vmatprep.subr.mxu0 0.0
  %446 = vmatpush1.msra.mxu0 %v57
  %447 = vmatprep.subr.mxu0 0.0
  %448 = vmatpush1.msra.mxu0 %v60
  %449 = vmatprep.subr.mxu0 0.0
  %450 = vmatpush1.msra.mxu0 %v63
  %451 = vmatprep.subr.mxu0 0.0
  %452 = vmatpush1.msra.mxu0 %v66
  %453 = vmatprep.subr.mxu0 0.0
  %454 = vmatpush1.msra.mxu0 %v69
  %455 = vmatprep.subr.mxu0 0.0
  %456 = vmatpush1.msra.mxu0 %v72
  %457 = vmatprep.subr.mxu0 0.0
  %458 = vmatpush1.msra.mxu0 %v75
  %459 = vmatprep.subr.mxu0 0.0
  %460 = vmatpush1.msra.mxu0 %v78
  %461 = vmatprep.subr.mxu0 0.0
  %462 = vmatpush1.msra.mxu0 0.0
  %463 = vmatprep.subr.mxu0 0.0
  %464 = vmatpush1.msra.mxu0 0.0
  %465 = vmatprep.subr.mxu0 0.0
  %466 = vmatpush1.msra.mxu0 0.0
  %467 = vmatprep.subr.mxu0 0.0
  %468 = vmatpush1.msra.mxu0 0.0
  %469 = vmatprep.subr.mxu0 0.0
  %470 = vmatpush1.msra.mxu0 0.0
  %471 = vmatprep.subr.mxu0 0.0
  %472 = vmatpush1.msra.mxu0 0.0
  %473 = vmatprep.subr.mxu0 0.0
  %474 = vmatpush1.msra.mxu0 0.0
  %475 = vmatprep.subr.mxu0 0.0
  %476 = vmatpush1.msra.mxu0 0.0
  %477 = vmatprep.subr.mxu0 0.0
  %478 = vmatpush1.msra.mxu0 0.0
  %479 = vmatprep.subr.mxu0 0.0
  %480 = vmatpush1.msra.mxu0 0.0
  %481 = vmatprep.subr.mxu0 0.0
  %482 = vmatpush1.msra.mxu0 0.0
  %483 = vmatprep.subr.mxu0 0.0
  %484 = vmatpush1.msra.mxu0 0.0
  %485 = vmatprep.subr.mxu0 0.0
  %486 = vmatpush1.msra.mxu0 0.0
  %487 = vmatprep.subr.mxu0 0.0
  %488 = vmatpush1.msra.mxu0 0.0
  %489 = vmatprep.subr.mxu0 0.0
  %490 = vmatpush1.msra.mxu0 0.0
  %491 = vmatprep.subr.mxu0 0.0
  %492 = vmatpush1.msra.mxu0 0.0
  %493 = vmatprep.mubr.f32.mxu0 0.0
  %494 = vmatmul.mubr.f32.gmra.mrb[0].mxu0 %v277
  %v495 = vpop.f32.mrb[0].mxu0
  %v496 = vadd.f32 0.0, %v495
  %v497 = vpop.f32.mrb[0].mxu0
  %498 = vdwg.mxu0
  %v501 = vcombine.low %v425, %v427
  %v503 = vunpack.c.l.s4 1983009808
  %v504 = vunpack.c.0.s8 %v503
  %v505 = vlaneseq
  %v506 = vshrl.u32 %v505, 7
  %v507 = vsub.s32 %v504, %v506
  %v508 = vrot.slane %v501, %v507
  %v510 = vadd.f32 %v357, %v508
  %v511 = vxor.u32 %v510, 2147483648
  %v512 = vmul.f32 %v511, 1.442695
  %v513 = vpow.pop %v512
  %v514 = vadd.f32 %v513, 1.0
  %v515 = vrcp.pop %v514
  %v516 = vmul.f32 1.0, %v515
  %v517 = vadd.f32 %v496, %v262
  %v518 = vmul.f32 %v516, %v517
  %v520 = vrot.slane %v357, 4
  %v522 = vadd.f32 %v520, %v518
  %v523 = vtanh.pop %v522
  %v525 = vrot.slane %v516, 2
  %v527 = vsub.f32 1.0, %v525
  %v528 = vmul.f32 %v527, %v523
  %v529 = vmul.f32 %v525, %v277
  %v530 = vadd.f32 %v528, %v529
  %531 = vmatprep.subr.mxu0 0.0
  %532 = vmatpush1.msra.mxu0 %v80
  %533 = vmatprep.subr.mxu0 0.0
  %534 = vmatpush1.msra.mxu0 %v81
  %535 = vmatprep.subr.mxu0 0.0
  %536 = vmatpush1.msra.mxu0 %v82
  %537 = vmatprep.subr.mxu0 0.0
  %538 = vmatpush1.msra.mxu0 %v83
  %539 = vmatprep.subr.mxu0 0.0
  %540 = vmatpush1.msra.mxu0 %v84
  %541 = vmatprep.subr.mxu0 0.0
  %542 = vmatpush1.msra.mxu0 %v85
  %543 = vmatprep.subr.mxu0 0.0
  %544 = vmatpush1.msra.mxu0 %v86
  %545 = vmatprep.subr.mxu0 0.0
  %546 = vmatpush1.msra.mxu0 %v87
  %547 = vmatprep.subr.mxu0 0.0
  %548 = vmatpush1.msra.mxu0 %v88
  %549 = vmatprep.subr.mxu0 0.0
  %550 = vmatpush1.msra.mxu0 %v89
  %551 = vmatprep.subr.mxu0 0.0
  %552 = vmatpush1.msra.mxu0 %v90
  %553 = vmatprep.subr.mxu0 0.0
  %554 = vmatpush1.msra.mxu0 %v91
  %555 = vmatprep.subr.mxu0 0.0
  %556 = vmatpush1.msra.mxu0 %v92
  %557 = vmatprep.subr.mxu0 0.0
  %558 = vmatpush1.msra.mxu0 %v93
  %559 = vmatprep.subr.mxu0 0.0
  %560 = vmatpush1.msra.mxu0 %v94
  %561 = vmatprep.subr.mxu0 0.0
  %562 = vmatpush1.msra.mxu0 %v95
  %563 = vmatprep.subr.mxu0 0.0
  %564 = vmatpush1.msra.mxu0 0.0
  %565 = vmatprep.subr.mxu0 0.0
  %566 = vmatpush1.msra.mxu0 0.0
  %567 = vmatprep.subr.mxu0 0.0
  %568 = vmatpush1.msra.mxu0 0.0
  %569 = vmatprep.subr.mxu0 0.0
  %570 = vmatpush1.msra.mxu0 0.0
  %571 = vmatprep.subr.mxu0 0.0
  %572 = vmatpush1.msra.mxu0 0.0
  %573 = vmatprep.subr.mxu0 0.0
  %574 = vmatpush1.msra.mxu0 0.0
  %575 = vmatprep.subr.mxu0 0.0
  %576 = vmatpush1.msra.mxu0 0.0
  %577 = vmatprep.subr.mxu0 0.0
  %578 = vmatpush1.msra.mxu0 0.0
  %579 = vmatprep.subr.mxu0 0.0
  %580 = vmatpush1.msra.mxu0 0.0
  %581 = vmatprep.subr.mxu0 0.0
  %582 = vmatpush1.msra.mxu0 0.0
  %583 = vmatprep.subr.mxu0 0.0
  %584 = vmatpush1.msra.mxu0 0.0
  %585 = vmatprep.subr.mxu0 0.0
  %586 = vmatpush1.msra.mxu0 0.0
  %587 = vmatprep.subr.mxu0 0.0
  %588 = vmatpush1.msra.mxu0 0.0
  %589 = vmatprep.subr.mxu0 0.0
  %590 = vmatpush1.msra.mxu0 0.0
  %591 = vmatprep.subr.mxu0 0.0
  %592 = vmatpush1.msra.mxu0 0.0
  %593 = vmatprep.subr.mxu0 0.0
  %594 = vmatpush1.msra.mxu0 0.0
  %595 = vmatprep.mubr.f32.mxu0 0.0
  %596 = vmatmul.mubr.f32.gmra.mrb[0].mxu0 %v530
  %v597 = vpop.f32.mrb[0].mxu0
  %v598 = vadd.f32 %v282, %v597
  %v599 = vpop.f32.mrb[0].mxu0
  %600 = vdwg.mxu0
  %s601 = scalar_lea.vmem %s6, 2
  %602 = vst.msk [vmem:[%s601] sm:$0x3] %vm354, %v598
  %s603 = scalar_lea.vmem %s0, 12
  %v604 = vld [vmem:[%s603] sm:$0x3f]
  %605 = vmatprep.subr.mxu0 %v32
  %606 = vmatpush1.msra.mxu0 %v31
  %607 = vmatprep.subr.mxu0 %v35
  %608 = vmatpush1.msra.mxu0 %v34
  %609 = vmatprep.subr.mxu0 %v38
  %610 = vmatpush1.msra.mxu0 %v37
  %611 = vmatprep.subr.mxu0 %v41
  %612 = vmatpush1.msra.mxu0 %v40
  %613 = vmatprep.subr.mxu0 %v44
  %614 = vmatpush1.msra.mxu0 %v43
  %615 = vmatprep.subr.mxu0 %v47
  %616 = vmatpush1.msra.mxu0 %v46
  %617 = vmatprep.subr.mxu0 %v50
  %618 = vmatpush1.msra.mxu0 %v49
  %619 = vmatprep.subr.mxu0 %v53
  %620 = vmatpush1.msra.mxu0 %v52
  %621 = vmatprep.subr.mxu0 %v56
  %622 = vmatpush1.msra.mxu0 %v55
  %623 = vmatprep.subr.mxu0 %v59
  %624 = vmatpush1.msra.mxu0 %v58
  %625 = vmatprep.subr.mxu0 %v62
  %626 = vmatpush1.msra.mxu0 %v61
  %627 = vmatprep.subr.mxu0 %v65
  %628 = vmatpush1.msra.mxu0 %v64
  %629 = vmatprep.subr.mxu0 %v68
  %630 = vmatpush1.msra.mxu0 %v67
  %631 = vmatprep.subr.mxu0 %v71
  %632 = vmatpush1.msra.mxu0 %v70
  %633 = vmatprep.subr.mxu0 %v74
  %634 = vmatpush1.msra.mxu0 %v73
  %635 = vmatprep.subr.mxu0 %v77
  %636 = vmatpush1.msra.mxu0 %v76
  %637 = vmatprep.subr.mxu0 0.0
  %638 = vmatpush1.msra.mxu0 0.0
  %639 = vmatprep.subr.mxu0 0.0
  %640 = vmatpush1.msra.mxu0 0.0
  %641 = vmatprep.subr.mxu0 0.0
  %642 = vmatpush1.msra.mxu0 0.0
  %643 = vmatprep.subr.mxu0 0.0
  %644 = vmatpush1.msra.mxu0 0.0
  %645 = vmatprep.subr.mxu0 0.0
  %646 = vmatpush1.msra.mxu0 0.0
  %647 = vmatprep.subr.mxu0 0.0
  %648 = vmatpush1.msra.mxu0 0.0
  %649 = vmatprep.subr.mxu0 0.0
  %650 = vmatpush1.msra.mxu0 0.0
  %651 = vmatprep.subr.mxu0 0.0
  %652 = vmatpush1.msra.mxu0 0.0
  %653 = vmatprep.subr.mxu0 0.0
  %654 = vmatpush1.msra.mxu0 0.0
  %655 = vmatprep.subr.mxu0 0.0
  %656 = vmatpush1.msra.mxu0 0.0
  %657 = vmatprep.subr.mxu0 0.0
  %658 = vmatpush1.msra.mxu0 0.0
  %659 = vmatprep.subr.mxu0 0.0
  %660 = vmatpush1.msra.mxu0 0.0
  %661 = vmatprep.subr.mxu0 0.0
  %662 = vmatpush1.msra.mxu0 0.0
  %663 = vmatprep.subr.mxu0 0.0
  %664 = vmatpush1.msra.mxu0 0.0
  %665 = vmatprep.subr.mxu0 0.0
  %666 = vmatpush1.msra.mxu0 0.0
  %667 = vmatprep.subr.mxu0 0.0
  %668 = vmatpush1.msra.mxu0 0.0
  %669 = vmatprep.mubr.f32.mxu0 0.0
  %670 = vmatmul.mubr.f32.gmra.mrb[0].mxu0 %v530
  %v671 = vpop.f32.mrb[0].mxu0
  %v672 = vadd.f32 0.0, %v671
  %v673 = vpop.f32.mrb[0].mxu0
  %v674 = vadd.f32 0.0, %v673
  %675 = vdwg.mxu0
  %676 = vmatprep.subr.mxu0 0.0
  %677 = vmatpush1.msra.mxu0 %v33
  %678 = vmatprep.subr.mxu0 0.0
  %679 = vmatpush1.msra.mxu0 %v36
  %680 = vmatprep.subr.mxu0 0.0
  %681 = vmatpush1.msra.mxu0 %v39
  %682 = vmatprep.subr.mxu0 0.0
  %683 = vmatpush1.msra.mxu0 %v42
  %684 = vmatprep.subr.mxu0 0.0
  %685 = vmatpush1.msra.mxu0 %v45
  %686 = vmatprep.subr.mxu0 0.0
  %687 = vmatpush1.msra.mxu0 %v48
  %688 = vmatprep.subr.mxu0 0.0
  %689 = vmatpush1.msra.mxu0 %v51
  %690 = vmatprep.subr.mxu0 0.0
  %691 = vmatpush1.msra.mxu0 %v54
  %692 = vmatprep.subr.mxu0 0.0
  %693 = vmatpush1.msra.mxu0 %v57
  %694 = vmatprep.subr.mxu0 0.0
  %695 = vmatpush1.msra.mxu0 %v60
  %696 = vmatprep.subr.mxu0 0.0
  %697 = vmatpush1.msra.mxu0 %v63
  %698 = vmatprep.subr.mxu0 0.0
  %699 = vmatpush1.msra.mxu0 %v66
  %700 = vmatprep.subr.mxu0 0.0
  %701 = vmatpush1.msra.mxu0 %v69
  %702 = vmatprep.subr.mxu0 0.0
  %703 = vmatpush1.msra.mxu0 %v72
  %704 = vmatprep.subr.mxu0 0.0
  %705 = vmatpush1.msra.mxu0 %v75
  %706 = vmatprep.subr.mxu0 0.0
  %707 = vmatpush1.msra.mxu0 %v78
  %708 = vmatprep.subr.mxu0 0.0
  %709 = vmatpush1.msra.mxu0 0.0
  %710 = vmatprep.subr.mxu0 0.0
  %711 = vmatpush1.msra.mxu0 0.0
  %712 = vmatprep.subr.mxu0 0.0
  %713 = vmatpush1.msra.mxu0 0.0
  %714 = vmatprep.subr.mxu0 0.0
  %715 = vmatpush1.msra.mxu0 0.0
  %716 = vmatprep.subr.mxu0 0.0
  %717 = vmatpush1.msra.mxu0 0.0
  %718 = vmatprep.subr.mxu0 0.0
  %719 = vmatpush1.msra.mxu0 0.0
  %720 = vmatprep.subr.mxu0 0.0
  %721 = vmatpush1.msra.mxu0 0.0
  %722 = vmatprep.subr.mxu0 0.0
  %723 = vmatpush1.msra.mxu0 0.0
  %724 = vmatprep.subr.mxu0 0.0
  %725 = vmatpush1.msra.mxu0 0.0
  %726 = vmatprep.subr.mxu0 0.0
  %727 = vmatpush1.msra.mxu0 0.0
  %728 = vmatprep.subr.mxu0 0.0
  %729 = vmatpush1.msra.mxu0 0.0
  %730 = vmatprep.subr.mxu0 0.0
  %731 = vmatpush1.msra.mxu0 0.0
  %732 = vmatprep.subr.mxu0 0.0
  %733 = vmatpush1.msra.mxu0 0.0
  %734 = vmatprep.subr.mxu0 0.0
  %735 = vmatpush1.msra.mxu0 0.0
  %736 = vmatprep.subr.mxu0 0.0
  %737 = vmatpush1.msra.mxu0 0.0
  %738 = vmatprep.subr.mxu0 0.0
  %739 = vmatpush1.msra.mxu0 0.0
  %740 = vmatprep.mubr.f32.mxu0 0.0
  %741 = vmatmul.mubr.f32.gmra.mrb[0].mxu0 %v530
  %v742 = vpop.f32.mrb[0].mxu0
  %v743 = vadd.f32 0.0, %v742
  %v744 = vpop.f32.mrb[0].mxu0
  %745 = vdwg.mxu0
  %v748 = vcombine.low %v672, %v674
  %v750 = vunpack.c.l.s4 1983009808
  %v751 = vunpack.c.0.s8 %v750
  %v752 = vlaneseq
  %v753 = vshrl.u32 %v752, 7
  %v754 = vsub.s32 %v751, %v753
  %v755 = vrot.slane %v748, %v754
  %v757 = vadd.f32 %v604, %v755
  %v758 = vxor.u32 %v757, 2147483648
  %v759 = vmul.f32 %v758, 1.442695
  %v760 = vpow.pop %v759
  %v761 = vadd.f32 %v760, 1.0
  %v762 = vrcp.pop %v761
  %v763 = vmul.f32 1.0, %v762
  %v764 = vadd.f32 %v743, %v262
  %v765 = vmul.f32 %v763, %v764
  %v767 = vrot.slane %v604, 4
  %v769 = vadd.f32 %v767, %v765
  %v770 = vtanh.pop %v769
  %v772 = vrot.slane %v763, 2
  %v774 = vsub.f32 1.0, %v772
  %v775 = vmul.f32 %v774, %v770
  %v776 = vmul.f32 %v772, %v530
  %v777 = vadd.f32 %v775, %v776
  %778 = vmatprep.subr.mxu0 0.0
  %779 = vmatpush1.msra.mxu0 %v80
  %780 = vmatprep.subr.mxu0 0.0
  %781 = vmatpush1.msra.mxu0 %v81
  %782 = vmatprep.subr.mxu0 0.0
  %783 = vmatpush1.msra.mxu0 %v82
  %784 = vmatprep.subr.mxu0 0.0
  %785 = vmatpush1.msra.mxu0 %v83
  %786 = vmatprep.subr.mxu0 0.0
  %787 = vmatpush1.msra.mxu0 %v84
  %788 = vmatprep.subr.mxu0 0.0
  %789 = vmatpush1.msra.mxu0 %v85
  %790 = vmatprep.subr.mxu0 0.0
  %791 = vmatpush1.msra.mxu0 %v86
  %792 = vmatprep.subr.mxu0 0.0
  %793 = vmatpush1.msra.mxu0 %v87
  %794 = vmatprep.subr.mxu0 0.0
  %795 = vmatpush1.msra.mxu0 %v88
  %796 = vmatprep.subr.mxu0 0.0
  %797 = vmatpush1.msra.mxu0 %v89
  %798 = vmatprep.subr.mxu0 0.0
  %799 = vmatpush1.msra.mxu0 %v90
  %800 = vmatprep.subr.mxu0 0.0
  %801 = vmatpush1.msra.mxu0 %v91
  %802 = vmatprep.subr.mxu0 0.0
  %803 = vmatpush1.msra.mxu0 %v92
  %804 = vmatprep.subr.mxu0 0.0
  %805 = vmatpush1.msra.mxu0 %v93
  %806 = vmatprep.subr.mxu0 0.0
  %807 = vmatpush1.msra.mxu0 %v94
  %808 = vmatprep.subr.mxu0 0.0
  %809 = vmatpush1.msra.mxu0 %v95
  %810 = vmatprep.subr.mxu0 0.0
  %811 = vmatpush1.msra.mxu0 0.0
  %812 = vmatprep.subr.mxu0 0.0
  %813 = vmatpush1.msra.mxu0 0.0
  %814 = vmatprep.subr.mxu0 0.0
  %815 = vmatpush1.msra.mxu0 0.0
  %816 = vmatprep.subr.mxu0 0.0
  %817 = vmatpush1.msra.mxu0 0.0
  %818 = vmatprep.subr.mxu0 0.0
  %819 = vmatpush1.msra.mxu0 0.0
  %820 = vmatprep.subr.mxu0 0.0
  %821 = vmatpush1.msra.mxu0 0.0
  %822 = vmatprep.subr.mxu0 0.0
  %823 = vmatpush1.msra.mxu0 0.0
  %824 = vmatprep.subr.mxu0 0.0
  %825 = vmatpush1.msra.mxu0 0.0
  %826 = vmatprep.subr.mxu0 0.0
  %827 = vmatpush1.msra.mxu0 0.0
  %828 = vmatprep.subr.mxu0 0.0
  %829 = vmatpush1.msra.mxu0 0.0
  %830 = vmatprep.subr.mxu0 0.0
  %831 = vmatpush1.msra.mxu0 0.0
  %832 = vmatprep.subr.mxu0 0.0
  %833 = vmatpush1.msra.mxu0 0.0
  %834 = vmatprep.subr.mxu0 0.0
  %835 = vmatpush1.msra.mxu0 0.0
  %836 = vmatprep.subr.mxu0 0.0
  %837 = vmatpush1.msra.mxu0 0.0
  %838 = vmatprep.subr.mxu0 0.0
  %839 = vmatpush1.msra.mxu0 0.0
  %840 = vmatprep.subr.mxu0 0.0
  %841 = vmatpush1.msra.mxu0 0.0
  %842 = vmatprep.mubr.f32.mxu0 0.0
  %843 = vmatmul.mubr.f32.gmra.mrb[0].mxu0 %v777
  %v844 = vpop.f32.mrb[0].mxu0
  %v845 = vadd.f32 %v282, %v844
  %v846 = vpop.f32.mrb[0].mxu0
  %847 = vdwg.mxu0
  %s848 = scalar_lea.vmem %s6, 4
  %849 = vst.msk [vmem:[%s848] sm:$0x3] %vm354, %v845
  %s850 = scalar_lea.vmem %s0, 18
  %v851 = vld [vmem:[%s850] sm:$0x3f]
  %852 = vmatprep.subr.mxu0 %v32
  %853 = vmatpush1.msra.mxu0 %v31
  %854 = vmatprep.subr.mxu0 %v35
  %855 = vmatpush1.msra.mxu0 %v34
  %856 = vmatprep.subr.mxu0 %v38
  %857 = vmatpush1.msra.mxu0 %v37
  %858 = vmatprep.subr.mxu0 %v41
  %859 = vmatpush1.msra.mxu0 %v40
  %860 = vmatprep.subr.mxu0 %v44
  %861 = vmatpush1.msra.mxu0 %v43
  %862 = vmatprep.subr.mxu0 %v47
  %863 = vmatpush1.msra.mxu0 %v46
  %864 = vmatprep.subr.mxu0 %v50
  %865 = vmatpush1.msra.mxu0 %v49
  %866 = vmatprep.subr.mxu0 %v53
  %867 = vmatpush1.msra.mxu0 %v52
  %868 = vmatprep.subr.mxu0 %v56
  %869 = vmatpush1.msra.mxu0 %v55
  %870 = vmatprep.subr.mxu0 %v59
  %871 = vmatpush1.msra.mxu0 %v58
  %872 = vmatprep.subr.mxu0 %v62
  %873 = vmatpush1.msra.mxu0 %v61
  %874 = vmatprep.subr.mxu0 %v65
  %875 = vmatpush1.msra.mxu0 %v64
  %876 = vmatprep.subr.mxu0 %v68
  %877 = vmatpush1.msra.mxu0 %v67
  %878 = vmatprep.subr.mxu0 %v71
  %879 = vmatpush1.msra.mxu0 %v70
  %880 = vmatprep.subr.mxu0 %v74
  %881 = vmatpush1.msra.mxu0 %v73
  %882 = vmatprep.subr.mxu0 %v77
  %883 = vmatpush1.msra.mxu0 %v76
  %884 = vmatprep.subr.mxu0 0.0
  %885 = vmatpush1.msra.mxu0 0.0
  %886 = vmatprep.subr.mxu0 0.0
  %887 = vmatpush1.msra.mxu0 0.0
  %888 = vmatprep.subr.mxu0 0.0
  %889 = vmatpush1.msra.mxu0 0.0
  %890 = vmatprep.subr.mxu0 0.0
  %891 = vmatpush1.msra.mxu0 0.0
  %892 = vmatprep.subr.mxu0 0.0
  %893 = vmatpush1.msra.mxu0 0.0
  %894 = vmatprep.subr.mxu0 0.0
  %895 = vmatpush1.msra.mxu0 0.0
  %896 = vmatprep.subr.mxu0 0.0
  %897 = vmatpush1.msra.mxu0 0.0
  %898 = vmatprep.subr.mxu0 0.0
  %899 = vmatpush1.msra.mxu0 0.0
  %900 = vmatprep.subr.mxu0 0.0
  %901 = vmatpush1.msra.mxu0 0.0
  %902 = vmatprep.subr.mxu0 0.0
  %903 = vmatpush1.msra.mxu0 0.0
  %904 = vmatprep.subr.mxu0 0.0
  %905 = vmatpush1.msra.mxu0 0.0
  %906 = vmatprep.subr.mxu0 0.0
  %907 = vmatpush1.msra.mxu0 0.0
  %908 = vmatprep.subr.mxu0 0.0
  %909 = vmatpush1.msra.mxu0 0.0
  %910 = vmatprep.subr.mxu0 0.0
  %911 = vmatpush1.msra.mxu0 0.0
  %912 = vmatprep.subr.mxu0 0.0
  %913 = vmatpush1.msra.mxu0 0.0
  %914 = vmatprep.subr.mxu0 0.0
  %915 = vmatpush1.msra.mxu0 0.0
  %916 = vmatprep.mubr.f32.mxu0 0.0
  %917 = vmatmul.mubr.f32.gmra.mrb[0].mxu0 %v777
  %v918 = vpop.f32.mrb[0].mxu0
  %v919 = vadd.f32 0.0, %v918
  %v920 = vpop.f32.mrb[0].mxu0
  %v921 = vadd.f32 0.0, %v920
  %922 = vdwg.mxu0
  %923 = vmatprep.subr.mxu0 0.0
  %924 = vmatpush1.msra.mxu0 %v33
  %925 = vmatprep.subr.mxu0 0.0
  %926 = vmatpush1.msra.mxu0 %v36
  %927 = vmatprep.subr.mxu0 0.0
  %928 = vmatpush1.msra.mxu0 %v39
  %929 = vmatprep.subr.mxu0 0.0
  %930 = vmatpush1.msra.mxu0 %v42
  %931 = vmatprep.subr.mxu0 0.0
  %932 = vmatpush1.msra.mxu0 %v45
  %933 = vmatprep.subr.mxu0 0.0
  %934 = vmatpush1.msra.mxu0 %v48
  %935 = vmatprep.subr.mxu0 0.0
  %936 = vmatpush1.msra.mxu0 %v51
  %937 = vmatprep.subr.mxu0 0.0
  %938 = vmatpush1.msra.mxu0 %v54
  %939 = vmatprep.subr.mxu0 0.0
  %940 = vmatpush1.msra.mxu0 %v57
  %941 = vmatprep.subr.mxu0 0.0
  %942 = vmatpush1.msra.mxu0 %v60
  %943 = vmatprep.subr.mxu0 0.0
  %944 = vmatpush1.msra.mxu0 %v63
  %945 = vmatprep.subr.mxu0 0.0
  %946 = vmatpush1.msra.mxu0 %v66
  %947 = vmatprep.subr.mxu0 0.0
  %948 = vmatpush1.msra.mxu0 %v69
  %949 = vmatprep.subr.mxu0 0.0
  %950 = vmatpush1.msra.mxu0 %v72
  %951 = vmatprep.subr.mxu0 0.0
  %952 = vmatpush1.msra.mxu0 %v75
  %953 = vmatprep.subr.mxu0 0.0
  %954 = vmatpush1.msra.mxu0 %v78
  %955 = vmatprep.subr.mxu0 0.0
  %956 = vmatpush1.msra.mxu0 0.0
  %957 = vmatprep.subr.mxu0 0.0
  %958 = vmatpush1.msra.mxu0 0.0
  %959 = vmatprep.subr.mxu0 0.0
  %960 = vmatpush1.msra.mxu0 0.0
  %961 = vmatprep.subr.mxu0 0.0
  %962 = vmatpush1.msra.mxu0 0.0
  %963 = vmatprep.subr.mxu0 0.0
  %964 = vmatpush1.msra.mxu0 0.0
  %965 = vmatprep.subr.mxu0 0.0
  %966 = vmatpush1.msra.mxu0 0.0
  %967 = vmatprep.subr.mxu0 0.0
  %968 = vmatpush1.msra.mxu0 0.0
  %969 = vmatprep.subr.mxu0 0.0
  %970 = vmatpush1.msra.mxu0 0.0
  %971 = vmatprep.subr.mxu0 0.0
  %972 = vmatpush1.msra.mxu0 0.0
  %973 = vmatprep.subr.mxu0 0.0
  %974 = vmatpush1.msra.mxu0 0.0
  %975 = vmatprep.subr.mxu0 0.0
  %976 = vmatpush1.msra.mxu0 0.0
  %977 = vmatprep.subr.mxu0 0.0
  %978 = vmatpush1.msra.mxu0 0.0
  %979 = vmatprep.subr.mxu0 0.0
  %980 = vmatpush1.msra.mxu0 0.0
  %981 = vmatprep.subr.mxu0 0.0
  %982 = vmatpush1.msra.mxu0 0.0
  %983 = vmatprep.subr.mxu0 0.0
  %984 = vmatpush1.msra.mxu0 0.0
  %985 = vmatprep.subr.mxu0 0.0
  %986 = vmatpush1.msra.mxu0 0.0
  %987 = vmatprep.mubr.f32.mxu0 0.0
  %988 = vmatmul.mubr.f32.gmra.mrb[0].mxu0 %v777
  %v989 = vpop.f32.mrb[0].mxu0
  %v990 = vadd.f32 0.0, %v989
  %v991 = vpop.f32.mrb[0].mxu0
  %992 = vdwg.mxu0
  %v995 = vcombine.low %v919, %v921
  %v997 = vunpack.c.l.s4 1983009808
  %v998 = vunpack.c.0.s8 %v997
  %v999 = vlaneseq
  %v1000 = vshrl.u32 %v999, 7
  %v1001 = vsub.s32 %v998, %v1000
  %v1002 = vrot.slane %v995, %v1001
  %v1004 = vadd.f32 %v851, %v1002
  %v1005 = vxor.u32 %v1004, 2147483648
  %v1006 = vmul.f32 %v1005, 1.442695
  %v1007 = vpow.pop %v1006
  %v1008 = vadd.f32 %v1007, 1.0
  %v1009 = vrcp.pop %v1008
  %v1010 = vmul.f32 1.0, %v1009
  %v1011 = vadd.f32 %v990, %v262
  %v1012 = vmul.f32 %v1010, %v1011
  %v1014 = vrot.slane %v851, 4
  %v1016 = vadd.f32 %v1014, %v1012
  %v1017 = vtanh.pop %v1016
  %v1019 = vrot.slane %v1010, 2
  %v1021 = vsub.f32 1.0, %v1019
  %v1022 = vmul.f32 %v1021, %v1017
  %v1023 = vmul.f32 %v1019, %v777
  %v1024 = vadd.f32 %v1022, %v1023
  %1025 = vmatprep.subr.mxu0 0.0
  %1026 = vmatpush1.msra.mxu0 %v80
  %1027 = vmatprep.subr.mxu0 0.0
  %1028 = vmatpush1.msra.mxu0 %v81
  %1029 = vmatprep.subr.mxu0 0.0
  %1030 = vmatpush1.msra.mxu0 %v82
  %1031 = vmatprep.subr.mxu0 0.0
  %1032 = vmatpush1.msra.mxu0 %v83
  %1033 = vmatprep.subr.mxu0 0.0
  %1034 = vmatpush1.msra.mxu0 %v84
  %1035 = vmatprep.subr.mxu0 0.0
  %1036 = vmatpush1.msra.mxu0 %v85
  %1037 = vmatprep.subr.mxu0 0.0
  %1038 = vmatpush1.msra.mxu0 %v86
  %1039 = vmatprep.subr.mxu0 0.0
  %1040 = vmatpush1.msra.mxu0 %v87
  %1041 = vmatprep.subr.mxu0 0.0
  %1042 = vmatpush1.msra.mxu0 %v88
  %1043 = vmatprep.subr.mxu0 0.0
  %1044 = vmatpush1.msra.mxu0 %v89
  %1045 = vmatprep.subr.mxu0 0.0
  %1046 = vmatpush1.msra.mxu0 %v90
  %1047 = vmatprep.subr.mxu0 0.0
  %1048 = vmatpush1.msra.mxu0 %v91
  %1049 = vmatprep.subr.mxu0 0.0
  %1050 = vmatpush1.msra.mxu0 %v92
  %1051 = vmatprep.subr.mxu0 0.0
  %1052 = vmatpush1.msra.mxu0 %v93
  %1053 = vmatprep.subr.mxu0 0.0
  %1054 = vmatpush1.msra.mxu0 %v94
  %1055 = vmatprep.subr.mxu0 0.0
  %1056 = vmatpush1.msra.mxu0 %v95
  %1057 = vmatprep.subr.mxu0 0.0
  %1058 = vmatpush1.msra.mxu0 0.0
  %1059 = vmatprep.subr.mxu0 0.0
  %1060 = vmatpush1.msra.mxu0 0.0
  %1061 = vmatprep.subr.mxu0 0.0
  %1062 = vmatpush1.msra.mxu0 0.0
  %1063 = vmatprep.subr.mxu0 0.0
  %1064 = vmatpush1.msra.mxu0 0.0
  %1065 = vmatprep.subr.mxu0 0.0
  %1066 = vmatpush1.msra.mxu0 0.0
  %1067 = vmatprep.subr.mxu0 0.0
  %1068 = vmatpush1.msra.mxu0 0.0
  %1069 = vmatprep.subr.mxu0 0.0
  %1070 = vmatpush1.msra.mxu0 0.0
  %1071 = vmatprep.subr.mxu0 0.0
  %1072 = vmatpush1.msra.mxu0 0.0
  %1073 = vmatprep.subr.mxu0 0.0
  %1074 = vmatpush1.msra.mxu0 0.0
  %1075 = vmatprep.subr.mxu0 0.0
  %1076 = vmatpush1.msra.mxu0 0.0
  %1077 = vmatprep.subr.mxu0 0.0
  %1078 = vmatpush1.msra.mxu0 0.0
  %1079 = vmatprep.subr.mxu0 0.0
  %1080 = vmatpush1.msra.mxu0 0.0
  %1081 = vmatprep.subr.mxu0 0.0
  %1082 = vmatpush1.msra.mxu0 0.0
  %1083 = vmatprep.subr.mxu0 0.0
  %1084 = vmatpush1.msra.mxu0 0.0
  %1085 = vmatprep.subr.mxu0 0.0
  %1086 = vmatpush1.msra.mxu0 0.0
  %1087 = vmatprep.subr.mxu0 0.0
  %1088 = vmatpush1.msra.mxu0 0.0
  %1089 = vmatprep.mubr.f32.mxu0 0.0
  %1090 = vmatmul.mubr.f32.gmra.mrb[0].mxu0 %v1024
  %v1091 = vpop.f32.mrb[0].mxu0
  %v1092 = vadd.f32 %v282, %v1091
  %v1093 = vpop.f32.mrb[0].mxu0
  %1094 = vdwg.mxu0
  %s1095 = scalar_lea.vmem %s6, 6
  %1096 = vst.msk [vmem:[%s1095] sm:$0x3] %vm354, %v1092
  %s1097 = scalar_lea.vmem %s0, 24
  %v1098 = vld [vmem:[%s1097] sm:$0x3f]
  %1099 = vmatprep.subr.mxu0 %v32
  %1100 = vmatpush1.msra.mxu0 %v31
  %1101 = vmatprep.subr.mxu0 %v35
  %1102 = vmatpush1.msra.mxu0 %v34
  %1103 = vmatprep.subr.mxu0 %v38
  %1104 = vmatpush1.msra.mxu0 %v37
  %1105 = vmatprep.subr.mxu0 %v41
  %1106 = vmatpush1.msra.mxu0 %v40
  %1107 = vmatprep.subr.mxu0 %v44
  %1108 = vmatpush1.msra.mxu0 %v43
  %1109 = vmatprep.subr.mxu0 %v47
  %1110 = vmatpush1.msra.mxu0 %v46
  %1111 = vmatprep.subr.mxu0 %v50
  %1112 = vmatpush1.msra.mxu0 %v49
  %1113 = vmatprep.subr.mxu0 %v53
  %1114 = vmatpush1.msra.mxu0 %v52
  %1115 = vmatprep.subr.mxu0 %v56
  %1116 = vmatpush1.msra.mxu0 %v55
  %1117 = vmatprep.subr.mxu0 %v59
  %1118 = vmatpush1.msra.mxu0 %v58
  %1119 = vmatprep.subr.mxu0 %v62
  %1120 = vmatpush1.msra.mxu0 %v61
  %1121 = vmatprep.subr.mxu0 %v65
  %1122 = vmatpush1.msra.mxu0 %v64
  %1123 = vmatprep.subr.mxu0 %v68
  %1124 = vmatpush1.msra.mxu0 %v67
  %1125 = vmatprep.subr.mxu0 %v71
  %1126 = vmatpush1.msra.mxu0 %v70
  %1127 = vmatprep.subr.mxu0 %v74
  %1128 = vmatpush1.msra.mxu0 %v73
  %1129 = vmatprep.subr.mxu0 %v77
  %1130 = vmatpush1.msra.mxu0 %v76
  %1131 = vmatprep.subr.mxu0 0.0
  %1132 = vmatpush1.msra.mxu0 0.0
  %1133 = vmatprep.subr.mxu0 0.0
  %1134 = vmatpush1.msra.mxu0 0.0
  %1135 = vmatprep.subr.mxu0 0.0
  %1136 = vmatpush1.msra.mxu0 0.0
  %1137 = vmatprep.subr.mxu0 0.0
  %1138 = vmatpush1.msra.mxu0 0.0
  %1139 = vmatprep.subr.mxu0 0.0
  %1140 = vmatpush1.msra.mxu0 0.0
  %1141 = vmatprep.subr.mxu0 0.0
  %1142 = vmatpush1.msra.mxu0 0.0
  %1143 = vmatprep.subr.mxu0 0.0
  %1144 = vmatpush1.msra.mxu0 0.0
  %1145 = vmatprep.subr.mxu0 0.0
  %1146 = vmatpush1.msra.mxu0 0.0
  %1147 = vmatprep.subr.mxu0 0.0
  %1148 = vmatpush1.msra.mxu0 0.0
  %1149 = vmatprep.subr.mxu0 0.0
  %1150 = vmatpush1.msra.mxu0 0.0
  %1151 = vmatprep.subr.mxu0 0.0
  %1152 = vmatpush1.msra.mxu0 0.0
  %1153 = vmatprep.subr.mxu0 0.0
  %1154 = vmatpush1.msra.mxu0 0.0
  %1155 = vmatprep.subr.mxu0 0.0
  %1156 = vmatpush1.msra.mxu0 0.0
  %1157 = vmatprep.subr.mxu0 0.0
  %1158 = vmatpush1.msra.mxu0 0.0
  %1159 = vmatprep.subr.mxu0 0.0
  %1160 = vmatpush1.msra.mxu0 0.0
  %1161 = vmatprep.subr.mxu0 0.0
  %1162 = vmatpush1.msra.mxu0 0.0
  %1163 = vmatprep.mubr.f32.mxu0 0.0
  %1164 = vmatmul.mubr.f32.gmra.mrb[0].mxu0 %v1024
  %v1165 = vpop.f32.mrb[0].mxu0
  %v1166 = vadd.f32 0.0, %v1165
  %v1167 = vpop.f32.mrb[0].mxu0
  %v1168 = vadd.f32 0.0, %v1167
  %1169 = vdwg.mxu0
  %1170 = vmatprep.subr.mxu0 0.0
  %1171 = vmatpush1.msra.mxu0 %v33
  %1172 = vmatprep.subr.mxu0 0.0
  %1173 = vmatpush1.msra.mxu0 %v36
  %1174 = vmatprep.subr.mxu0 0.0
  %1175 = vmatpush1.msra.mxu0 %v39
  %1176 = vmatprep.subr.mxu0 0.0
  %1177 = vmatpush1.msra.mxu0 %v42
  %1178 = vmatprep.subr.mxu0 0.0
  %1179 = vmatpush1.msra.mxu0 %v45
  %1180 = vmatprep.subr.mxu0 0.0
  %1181 = vmatpush1.msra.mxu0 %v48
  %1182 = vmatprep.subr.mxu0 0.0
  %1183 = vmatpush1.msra.mxu0 %v51
  %1184 = vmatprep.subr.mxu0 0.0
  %1185 = vmatpush1.msra.mxu0 %v54
  %1186 = vmatprep.subr.mxu0 0.0
  %1187 = vmatpush1.msra.mxu0 %v57
  %1188 = vmatprep.subr.mxu0 0.0
  %1189 = vmatpush1.msra.mxu0 %v60
  %1190 = vmatprep.subr.mxu0 0.0
  %1191 = vmatpush1.msra.mxu0 %v63
  %1192 = vmatprep.subr.mxu0 0.0
  %1193 = vmatpush1.msra.mxu0 %v66
  %1194 = vmatprep.subr.mxu0 0.0
  %1195 = vmatpush1.msra.mxu0 %v69
  %1196 = vmatprep.subr.mxu0 0.0
  %1197 = vmatpush1.msra.mxu0 %v72
  %1198 = vmatprep.subr.mxu0 0.0
  %1199 = vmatpush1.msra.mxu0 %v75
  %1200 = vmatprep.subr.mxu0 0.0
  %1201 = vmatpush1.msra.mxu0 %v78
  %1202 = vmatprep.subr.mxu0 0.0
  %1203 = vmatpush1.msra.mxu0 0.0
  %1204 = vmatprep.subr.mxu0 0.0
  %1205 = vmatpush1.msra.mxu0 0.0
  %1206 = vmatprep.subr.mxu0 0.0
  %1207 = vmatpush1.msra.mxu0 0.0
  %1208 = vmatprep.subr.mxu0 0.0
  %1209 = vmatpush1.msra.mxu0 0.0
  %1210 = vmatprep.subr.mxu0 0.0
  %1211 = vmatpush1.msra.mxu0 0.0
  %1212 = vmatprep.subr.mxu0 0.0
  %1213 = vmatpush1.msra.mxu0 0.0
  %1214 = vmatprep.subr.mxu0 0.0
  %1215 = vmatpush1.msra.mxu0 0.0
  %1216 = vmatprep.subr.mxu0 0.0
  %1217 = vmatpush1.msra.mxu0 0.0
  %1218 = vmatprep.subr.mxu0 0.0
  %1219 = vmatpush1.msra.mxu0 0.0
  %1220 = vmatprep.subr.mxu0 0.0
  %1221 = vmatpush1.msra.mxu0 0.0
  %1222 = vmatprep.subr.mxu0 0.0
  %1223 = vmatpush1.msra.mxu0 0.0
  %1224 = vmatprep.subr.mxu0 0.0
  %1225 = vmatpush1.msra.mxu0 0.0
  %1226 = vmatprep.subr.mxu0 0.0
  %1227 = vmatpush1.msra.mxu0 0.0
  %1228 = vmatprep.subr.mxu0 0.0
  %1229 = vmatpush1.msra.mxu0 0.0
  %1230 = vmatprep.subr.mxu0 0.0
  %1231 = vmatpush1.msra.mxu0 0.0
  %1232 = vmatprep.subr.mxu0 0.0
  %1233 = vmatpush1.msra.mxu0 0.0
  %1234 = vmatprep.mubr.f32.mxu0 0.0
  %1235 = vmatmul.mubr.f32.gmra.mrb[0].mxu0 %v1024
  %v1236 = vpop.f32.mrb[0].mxu0
  %v1237 = vadd.f32 0.0, %v1236
  %v1238 = vpop.f32.mrb[0].mxu0
  %1239 = vdwg.mxu0
  %v1242 = vcombine.low %v1166, %v1168
  %v1244 = vunpack.c.l.s4 1983009808
  %v1245 = vunpack.c.0.s8 %v1244
  %v1246 = vlaneseq
  %v1247 = vshrl.u32 %v1246, 7
  %v1248 = vsub.s32 %v1245, %v1247
  %v1249 = vrot.slane %v1242, %v1248
  %v1251 = vadd.f32 %v1098, %v1249
  %v1252 = vxor.u32 %v1251, 2147483648
  %v1253 = vmul.f32 %v1252, 1.442695
  %v1254 = vpow.pop %v1253
  %v1255 = vadd.f32 %v1254, 1.0
  %v1256 = vrcp.pop %v1255
  %v1257 = vmul.f32 1.0, %v1256
  %v1258 = vadd.f32 %v1237, %v262
  %v1259 = vmul.f32 %v1257, %v1258
  %v1261 = vrot.slane %v1098, 4
  %v1263 = vadd.f32 %v1261, %v1259
  %v1264 = vtanh.pop %v1263
  %v1266 = vrot.slane %v1257, 2
  %v1268 = vsub.f32 1.0, %v1266
  %v1269 = vmul.f32 %v1268, %v1264
  %v1270 = vmul.f32 %v1266, %v1024
  %v1271 = vadd.f32 %v1269, %v1270
  %1272 = vmatprep.subr.mxu0 0.0
  %1273 = vmatpush1.msra.mxu0 %v80
  %1274 = vmatprep.subr.mxu0 0.0
  %1275 = vmatpush1.msra.mxu0 %v81
  %1276 = vmatprep.subr.mxu0 0.0
  %1277 = vmatpush1.msra.mxu0 %v82
  %1278 = vmatprep.subr.mxu0 0.0
  %1279 = vmatpush1.msra.mxu0 %v83
  %1280 = vmatprep.subr.mxu0 0.0
  %1281 = vmatpush1.msra.mxu0 %v84
  %1282 = vmatprep.subr.mxu0 0.0
  %1283 = vmatpush1.msra.mxu0 %v85
  %1284 = vmatprep.subr.mxu0 0.0
  %1285 = vmatpush1.msra.mxu0 %v86
  %1286 = vmatprep.subr.mxu0 0.0
  %1287 = vmatpush1.msra.mxu0 %v87
  %1288 = vmatprep.subr.mxu0 0.0
  %1289 = vmatpush1.msra.mxu0 %v88
  %1290 = vmatprep.subr.mxu0 0.0
  %1291 = vmatpush1.msra.mxu0 %v89
  %1292 = vmatprep.subr.mxu0 0.0
  %1293 = vmatpush1.msra.mxu0 %v90
  %1294 = vmatprep.subr.mxu0 0.0
  %1295 = vmatpush1.msra.mxu0 %v91
  %1296 = vmatprep.subr.mxu0 0.0
  %1297 = vmatpush1.msra.mxu0 %v92
  %1298 = vmatprep.subr.mxu0 0.0
  %1299 = vmatpush1.msra.mxu0 %v93
  %1300 = vmatprep.subr.mxu0 0.0
  %1301 = vmatpush1.msra.mxu0 %v94
  %1302 = vmatprep.subr.mxu0 0.0
  %1303 = vmatpush1.msra.mxu0 %v95
  %1304 = vmatprep.subr.mxu0 0.0
  %1305 = vmatpush1.msra.mxu0 0.0
  %1306 = vmatprep.subr.mxu0 0.0
  %1307 = vmatpush1.msra.mxu0 0.0
  %1308 = vmatprep.subr.mxu0 0.0
  %1309 = vmatpush1.msra.mxu0 0.0
  %1310 = vmatprep.subr.mxu0 0.0
  %1311 = vmatpush1.msra.mxu0 0.0
  %1312 = vmatprep.subr.mxu0 0.0
  %1313 = vmatpush1.msra.mxu0 0.0
  %1314 = vmatprep.subr.mxu0 0.0
  %1315 = vmatpush1.msra.mxu0 0.0
  %1316 = vmatprep.subr.mxu0 0.0
  %1317 = vmatpush1.msra.mxu0 0.0
  %1318 = vmatprep.subr.mxu0 0.0
  %1319 = vmatpush1.msra.mxu0 0.0
  %1320 = vmatprep.subr.mxu0 0.0
  %1321 = vmatpush1.msra.mxu0 0.0
  %1322 = vmatprep.subr.mxu0 0.0
  %1323 = vmatpush1.msra.mxu0 0.0
  %1324 = vmatprep.subr.mxu0 0.0
  %1325 = vmatpush1.msra.mxu0 0.0
  %1326 = vmatprep.subr.mxu0 0.0
  %1327 = vmatpush1.msra.mxu0 0.0
  %1328 = vmatprep.subr.mxu0 0.0
  %1329 = vmatpush1.msra.mxu0 0.0
  %1330 = vmatprep.subr.mxu0 0.0
  %1331 = vmatpush1.msra.mxu0 0.0
  %1332 = vmatprep.subr.mxu0 0.0
  %1333 = vmatpush1.msra.mxu0 0.0
  %1334 = vmatprep.subr.mxu0 0.0
  %1335 = vmatpush1.msra.mxu0 0.0
  %1336 = vmatprep.mubr.f32.mxu0 0.0
  %1337 = vmatmul.mubr.f32.gmra.mrb[0].mxu0 %v1271
  %v1338 = vpop.f32.mrb[0].mxu0
  %v1339 = vadd.f32 %v282, %v1338
  %v1340 = vpop.f32.mrb[0].mxu0
  %1341 = vdwg.mxu0
  %s1342 = scalar_lea.vmem %s6, 8
  %1343 = vst.msk [vmem:[%s1342] sm:$0x3] %vm354, %v1339
  %s1344 = scalar_lea.vmem %s0, 30
  %v1345 = vld [vmem:[%s1344] sm:$0x3f]
  %1346 = vmatprep.subr.mxu0 %v32
  %1347 = vmatpush1.msra.mxu0 %v31
  %1348 = vmatprep.subr.mxu0 %v35
  %1349 = vmatpush1.msra.mxu0 %v34
  %1350 = vmatprep.subr.mxu0 %v38
  %1351 = vmatpush1.msra.mxu0 %v37
  %1352 = vmatprep.subr.mxu0 %v41
  %1353 = vmatpush1.msra.mxu0 %v40
  %1354 = vmatprep.subr.mxu0 %v44
  %1355 = vmatpush1.msra.mxu0 %v43
  %1356 = vmatprep.subr.mxu0 %v47
  %1357 = vmatpush1.msra.mxu0 %v46
  %1358 = vmatprep.subr.mxu0 %v50
  %1359 = vmatpush1.msra.mxu0 %v49
  %1360 = vmatprep.subr.mxu0 %v53
  %1361 = vmatpush1.msra.mxu0 %v52
  %1362 = vmatprep.subr.mxu0 %v56
  %1363 = vmatpush1.msra.mxu0 %v55
  %1364 = vmatprep.subr.mxu0 %v59
  %1365 = vmatpush1.msra.mxu0 %v58
  %1366 = vmatprep.subr.mxu0 %v62
  %1367 = vmatpush1.msra.mxu0 %v61
  %1368 = vmatprep.subr.mxu0 %v65
  %1369 = vmatpush1.msra.mxu0 %v64
  %1370 = vmatprep.subr.mxu0 %v68
  %1371 = vmatpush1.msra.mxu0 %v67
  %1372 = vmatprep.subr.mxu0 %v71
  %1373 = vmatpush1.msra.mxu0 %v70
  %1374 = vmatprep.subr.mxu0 %v74
  %1375 = vmatpush1.msra.mxu0 %v73
  %1376 = vmatprep.subr.mxu0 %v77
  %1377 = vmatpush1.msra.mxu0 %v76
  %1378 = vmatprep.subr.mxu0 0.0
  %1379 = vmatpush1.msra.mxu0 0.0
  %1380 = vmatprep.subr.mxu0 0.0
  %1381 = vmatpush1.msra.mxu0 0.0
  %1382 = vmatprep.subr.mxu0 0.0
  %1383 = vmatpush1.msra.mxu0 0.0
  %1384 = vmatprep.subr.mxu0 0.0
  %1385 = vmatpush1.msra.mxu0 0.0
  %1386 = vmatprep.subr.mxu0 0.0
  %1387 = vmatpush1.msra.mxu0 0.0
  %1388 = vmatprep.subr.mxu0 0.0
  %1389 = vmatpush1.msra.mxu0 0.0
  %1390 = vmatprep.subr.mxu0 0.0
  %1391 = vmatpush1.msra.mxu0 0.0
  %1392 = vmatprep.subr.mxu0 0.0
  %1393 = vmatpush1.msra.mxu0 0.0
  %1394 = vmatprep.subr.mxu0 0.0
  %1395 = vmatpush1.msra.mxu0 0.0
  %1396 = vmatprep.subr.mxu0 0.0
  %1397 = vmatpush1.msra.mxu0 0.0
  %1398 = vmatprep.subr.mxu0 0.0
  %1399 = vmatpush1.msra.mxu0 0.0
  %1400 = vmatprep.subr.mxu0 0.0
  %1401 = vmatpush1.msra.mxu0 0.0
  %1402 = vmatprep.subr.mxu0 0.0
  %1403 = vmatpush1.msra.mxu0 0.0
  %1404 = vmatprep.subr.mxu0 0.0
  %1405 = vmatpush1.msra.mxu0 0.0
  %1406 = vmatprep.subr.mxu0 0.0
  %1407 = vmatpush1.msra.mxu0 0.0
  %1408 = vmatprep.subr.mxu0 0.0
  %1409 = vmatpush1.msra.mxu0 0.0
  %1410 = vmatprep.mubr.f32.mxu0 0.0
  %1411 = vmatmul.mubr.f32.gmra.mrb[0].mxu0 %v1271
  %v1412 = vpop.f32.mrb[0].mxu0
  %v1413 = vadd.f32 0.0, %v1412
  %v1414 = vpop.f32.mrb[0].mxu0
  %v1415 = vadd.f32 0.0, %v1414
  %1416 = vdwg.mxu0
  %1417 = vmatprep.subr.mxu0 0.0
  %1418 = vmatpush1.msra.mxu0 %v33
  %1419 = vmatprep.subr.mxu0 0.0
  %1420 = vmatpush1.msra.mxu0 %v36
  %1421 = vmatprep.subr.mxu0 0.0
  %1422 = vmatpush1.msra.mxu0 %v39
  %1423 = vmatprep.subr.mxu0 0.0
  %1424 = vmatpush1.msra.mxu0 %v42
  %1425 = vmatprep.subr.mxu0 0.0
  %1426 = vmatpush1.msra.mxu0 %v45
  %1427 = vmatprep.subr.mxu0 0.0
  %1428 = vmatpush1.msra.mxu0 %v48
  %1429 = vmatprep.subr.mxu0 0.0
  %1430 = vmatpush1.msra.mxu0 %v51
  %1431 = vmatprep.subr.mxu0 0.0
  %1432 = vmatpush1.msra.mxu0 %v54
  %1433 = vmatprep.subr.mxu0 0.0
  %1434 = vmatpush1.msra.mxu0 %v57
  %1435 = vmatprep.subr.mxu0 0.0
  %1436 = vmatpush1.msra.mxu0 %v60
  %1437 = vmatprep.subr.mxu0 0.0
  %1438 = vmatpush1.msra.mxu0 %v63
  %1439 = vmatprep.subr.mxu0 0.0
  %1440 = vmatpush1.msra.mxu0 %v66
  %1441 = vmatprep.subr.mxu0 0.0
  %1442 = vmatpush1.msra.mxu0 %v69
  %1443 = vmatprep.subr.mxu0 0.0
  %1444 = vmatpush1.msra.mxu0 %v72
  %1445 = vmatprep.subr.mxu0 0.0
  %1446 = vmatpush1.msra.mxu0 %v75
  %1447 = vmatprep.subr.mxu0 0.0
  %1448 = vmatpush1.msra.mxu0 %v78
  %1449 = vmatprep.subr.mxu0 0.0
  %1450 = vmatpush1.msra.mxu0 0.0
  %1451 = vmatprep.subr.mxu0 0.0
  %1452 = vmatpush1.msra.mxu0 0.0
  %1453 = vmatprep.subr.mxu0 0.0
  %1454 = vmatpush1.msra.mxu0 0.0
  %1455 = vmatprep.subr.mxu0 0.0
  %1456 = vmatpush1.msra.mxu0 0.0
  %1457 = vmatprep.subr.mxu0 0.0
  %1458 = vmatpush1.msra.mxu0 0.0
  %1459 = vmatprep.subr.mxu0 0.0
  %1460 = vmatpush1.msra.mxu0 0.0
  %1461 = vmatprep.subr.mxu0 0.0
  %1462 = vmatpush1.msra.mxu0 0.0
  %1463 = vmatprep.subr.mxu0 0.0
  %1464 = vmatpush1.msra.mxu0 0.0
  %1465 = vmatprep.subr.mxu0 0.0
  %1466 = vmatpush1.msra.mxu0 0.0
  %1467 = vmatprep.subr.mxu0 0.0
  %1468 = vmatpush1.msra.mxu0 0.0
  %1469 = vmatprep.subr.mxu0 0.0
  %1470 = vmatpush1.msra.mxu0 0.0
  %1471 = vmatprep.subr.mxu0 0.0
  %1472 = vmatpush1.msra.mxu0 0.0
  %1473 = vmatprep.subr.mxu0 0.0
  %1474 = vmatpush1.msra.mxu0 0.0
  %1475 = vmatprep.subr.mxu0 0.0
  %1476 = vmatpush1.msra.mxu0 0.0
  %1477 = vmatprep.subr.mxu0 0.0
  %1478 = vmatpush1.msra.mxu0 0.0
  %1479 = vmatprep.subr.mxu0 0.0
  %1480 = vmatpush1.msra.mxu0 0.0
  %1481 = vmatprep.mubr.f32.mxu0 0.0
  %1482 = vmatmul.mubr.f32.gmra.mrb[0].mxu0 %v1271
  %v1483 = vpop.f32.mrb[0].mxu0
  %v1484 = vadd.f32 0.0, %v1483
  %v1485 = vpop.f32.mrb[0].mxu0
  %1486 = vdwg.mxu0
  %v1489 = vcombine.low %v1413, %v1415
  %v1491 = vunpack.c.l.s4 1983009808
  %v1492 = vunpack.c.0.s8 %v1491
  %v1493 = vlaneseq
  %v1494 = vshrl.u32 %v1493, 7
  %v1495 = vsub.s32 %v1492, %v1494
  %v1496 = vrot.slane %v1489, %v1495
  %v1498 = vadd.f32 %v1345, %v1496
  %v1499 = vxor.u32 %v1498, 2147483648
  %v1500 = vmul.f32 %v1499, 1.442695
  %v1501 = vpow.pop %v1500
  %v1502 = vadd.f32 %v1501, 1.0
  %v1503 = vrcp.pop %v1502
  %v1504 = vmul.f32 1.0, %v1503
  %v1505 = vadd.f32 %v1484, %v262
  %v1506 = vmul.f32 %v1504, %v1505
  %v1508 = vrot.slane %v1345, 4
  %v1510 = vadd.f32 %v1508, %v1506
  %v1511 = vtanh.pop %v1510
  %v1513 = vrot.slane %v1504, 2
  %v1515 = vsub.f32 1.0, %v1513
  %v1516 = vmul.f32 %v1515, %v1511
  %v1517 = vmul.f32 %v1513, %v1271
  %v1518 = vadd.f32 %v1516, %v1517
  %1519 = vmatprep.subr.mxu0 0.0
  %1520 = vmatpush1.msra.mxu0 %v80
  %1521 = vmatprep.subr.mxu0 0.0
  %1522 = vmatpush1.msra.mxu0 %v81
  %1523 = vmatprep.subr.mxu0 0.0
  %1524 = vmatpush1.msra.mxu0 %v82
  %1525 = vmatprep.subr.mxu0 0.0
  %1526 = vmatpush1.msra.mxu0 %v83
  %1527 = vmatprep.subr.mxu0 0.0
  %1528 = vmatpush1.msra.mxu0 %v84
  %1529 = vmatprep.subr.mxu0 0.0
  %1530 = vmatpush1.msra.mxu0 %v85
  %1531 = vmatprep.subr.mxu0 0.0
  %1532 = vmatpush1.msra.mxu0 %v86
  %1533 = vmatprep.subr.mxu0 0.0
  %1534 = vmatpush1.msra.mxu0 %v87
  %1535 = vmatprep.subr.mxu0 0.0
  %1536 = vmatpush1.msra.mxu0 %v88
  %1537 = vmatprep.subr.mxu0 0.0
  %1538 = vmatpush1.msra.mxu0 %v89
  %1539 = vmatprep.subr.mxu0 0.0
  %1540 = vmatpush1.msra.mxu0 %v90
  %1541 = vmatprep.subr.mxu0 0.0
  %1542 = vmatpush1.msra.mxu0 %v91
  %1543 = vmatprep.subr.mxu0 0.0
  %1544 = vmatpush1.msra.mxu0 %v92
  %1545 = vmatprep.subr.mxu0 0.0
  %1546 = vmatpush1.msra.mxu0 %v93
  %1547 = vmatprep.subr.mxu0 0.0
  %1548 = vmatpush1.msra.mxu0 %v94
  %1549 = vmatprep.subr.mxu0 0.0
  %1550 = vmatpush1.msra.mxu0 %v95
  %1551 = vmatprep.subr.mxu0 0.0
  %1552 = vmatpush1.msra.mxu0 0.0
  %1553 = vmatprep.subr.mxu0 0.0
  %1554 = vmatpush1.msra.mxu0 0.0
  %1555 = vmatprep.subr.mxu0 0.0
  %1556 = vmatpush1.msra.mxu0 0.0
  %1557 = vmatprep.subr.mxu0 0.0
  %1558 = vmatpush1.msra.mxu0 0.0
  %1559 = vmatprep.subr.mxu0 0.0
  %1560 = vmatpush1.msra.mxu0 0.0
  %1561 = vmatprep.subr.mxu0 0.0
  %1562 = vmatpush1.msra.mxu0 0.0
  %1563 = vmatprep.subr.mxu0 0.0
  %1564 = vmatpush1.msra.mxu0 0.0
  %1565 = vmatprep.subr.mxu0 0.0
  %1566 = vmatpush1.msra.mxu0 0.0
  %1567 = vmatprep.subr.mxu0 0.0
  %1568 = vmatpush1.msra.mxu0 0.0
  %1569 = vmatprep.subr.mxu0 0.0
  %1570 = vmatpush1.msra.mxu0 0.0
  %1571 = vmatprep.subr.mxu0 0.0
  %1572 = vmatpush1.msra.mxu0 0.0
  %1573 = vmatprep.subr.mxu0 0.0
  %1574 = vmatpush1.msra.mxu0 0.0
  %1575 = vmatprep.subr.mxu0 0.0
  %1576 = vmatpush1.msra.mxu0 0.0
  %1577 = vmatprep.subr.mxu0 0.0
  %1578 = vmatpush1.msra.mxu0 0.0
  %1579 = vmatprep.subr.mxu0 0.0
  %1580 = vmatpush1.msra.mxu0 0.0
  %1581 = vmatprep.subr.mxu0 0.0
  %1582 = vmatpush1.msra.mxu0 0.0
  %1583 = vmatprep.mubr.f32.mxu0 0.0
  %1584 = vmatmul.mubr.f32.gmra.mrb[0].mxu0 %v1518
  %v1585 = vpop.f32.mrb[0].mxu0
  %v1586 = vadd.f32 %v282, %v1585
  %v1587 = vpop.f32.mrb[0].mxu0
  %1588 = vdwg.mxu0
  %s1589 = scalar_lea.vmem %s6, 10
  %1590 = vst.msk [vmem:[%s1589] sm:$0x3] %vm354, %v1586
  %s1591 = scalar_lea.vmem %s0, 36
  %v1592 = vld [vmem:[%s1591] sm:$0x3f]
  %1593 = vmatprep.subr.mxu0 %v32
  %1594 = vmatpush1.msra.mxu0 %v31
  %1595 = vmatprep.subr.mxu0 %v35
  %1596 = vmatpush1.msra.mxu0 %v34
  %1597 = vmatprep.subr.mxu0 %v38
  %1598 = vmatpush1.msra.mxu0 %v37
  %1599 = vmatprep.subr.mxu0 %v41
  %1600 = vmatpush1.msra.mxu0 %v40
  %1601 = vmatprep.subr.mxu0 %v44
  %1602 = vmatpush1.msra.mxu0 %v43
  %1603 = vmatprep.subr.mxu0 %v47
  %1604 = vmatpush1.msra.mxu0 %v46
  %1605 = vmatprep.subr.mxu0 %v50
  %1606 = vmatpush1.msra.mxu0 %v49
  %1607 = vmatprep.subr.mxu0 %v53
  %1608 = vmatpush1.msra.mxu0 %v52
  %1609 = vmatprep.subr.mxu0 %v56
  %1610 = vmatpush1.msra.mxu0 %v55
  %1611 = vmatprep.subr.mxu0 %v59
  %1612 = vmatpush1.msra.mxu0 %v58
  %1613 = vmatprep.subr.mxu0 %v62
  %1614 = vmatpush1.msra.mxu0 %v61
  %1615 = vmatprep.subr.mxu0 %v65
  %1616 = vmatpush1.msra.mxu0 %v64
  %1617 = vmatprep.subr.mxu0 %v68
  %1618 = vmatpush1.msra.mxu0 %v67
  %1619 = vmatprep.subr.mxu0 %v71
  %1620 = vmatpush1.msra.mxu0 %v70
  %1621 = vmatprep.subr.mxu0 %v74
  %1622 = vmatpush1.msra.mxu0 %v73
  %1623 = vmatprep.subr.mxu0 %v77
  %1624 = vmatpush1.msra.mxu0 %v76
  %1625 = vmatprep.subr.mxu0 0.0
  %1626 = vmatpush1.msra.mxu0 0.0
  %1627 = vmatprep.subr.mxu0 0.0
  %1628 = vmatpush1.msra.mxu0 0.0
  %1629 = vmatprep.subr.mxu0 0.0
  %1630 = vmatpush1.msra.mxu0 0.0
  %1631 = vmatprep.subr.mxu0 0.0
  %1632 = vmatpush1.msra.mxu0 0.0
  %1633 = vmatprep.subr.mxu0 0.0
  %1634 = vmatpush1.msra.mxu0 0.0
  %1635 = vmatprep.subr.mxu0 0.0
  %1636 = vmatpush1.msra.mxu0 0.0
  %1637 = vmatprep.subr.mxu0 0.0
  %1638 = vmatpush1.msra.mxu0 0.0
  %1639 = vmatprep.subr.mxu0 0.0
  %1640 = vmatpush1.msra.mxu0 0.0
  %1641 = vmatprep.subr.mxu0 0.0
  %1642 = vmatpush1.msra.mxu0 0.0
  %1643 = vmatprep.subr.mxu0 0.0
  %1644 = vmatpush1.msra.mxu0 0.0
  %1645 = vmatprep.subr.mxu0 0.0
  %1646 = vmatpush1.msra.mxu0 0.0
  %1647 = vmatprep.subr.mxu0 0.0
  %1648 = vmatpush1.msra.mxu0 0.0
  %1649 = vmatprep.subr.mxu0 0.0
  %1650 = vmatpush1.msra.mxu0 0.0
  %1651 = vmatprep.subr.mxu0 0.0
  %1652 = vmatpush1.msra.mxu0 0.0
  %1653 = vmatprep.subr.mxu0 0.0
  %1654 = vmatpush1.msra.mxu0 0.0
  %1655 = vmatprep.subr.mxu0 0.0
  %1656 = vmatpush1.msra.mxu0 0.0
  %1657 = vmatprep.mubr.f32.mxu0 0.0
  %1658 = vmatmul.mubr.f32.gmra.mrb[0].mxu0 %v1518
  %v1659 = vpop.f32.mrb[0].mxu0
  %v1660 = vadd.f32 0.0, %v1659
  %v1661 = vpop.f32.mrb[0].mxu0
  %v1662 = vadd.f32 0.0, %v1661
  %1663 = vdwg.mxu0
  %1664 = vmatprep.subr.mxu0 0.0
  %1665 = vmatpush1.msra.mxu0 %v33
  %1666 = vmatprep.subr.mxu0 0.0
  %1667 = vmatpush1.msra.mxu0 %v36
  %1668 = vmatprep.subr.mxu0 0.0
  %1669 = vmatpush1.msra.mxu0 %v39
  %1670 = vmatprep.subr.mxu0 0.0
  %1671 = vmatpush1.msra.mxu0 %v42
  %1672 = vmatprep.subr.mxu0 0.0
  %1673 = vmatpush1.msra.mxu0 %v45
  %1674 = vmatprep.subr.mxu0 0.0
  %1675 = vmatpush1.msra.mxu0 %v48
  %1676 = vmatprep.subr.mxu0 0.0
  %1677 = vmatpush1.msra.mxu0 %v51
  %1678 = vmatprep.subr.mxu0 0.0
  %1679 = vmatpush1.msra.mxu0 %v54
  %1680 = vmatprep.subr.mxu0 0.0
  %1681 = vmatpush1.msra.mxu0 %v57
  %1682 = vmatprep.subr.mxu0 0.0
  %1683 = vmatpush1.msra.mxu0 %v60
  %1684 = vmatprep.subr.mxu0 0.0
  %1685 = vmatpush1.msra.mxu0 %v63
  %1686 = vmatprep.subr.mxu0 0.0
  %1687 = vmatpush1.msra.mxu0 %v66
  %1688 = vmatprep.subr.mxu0 0.0
  %1689 = vmatpush1.msra.mxu0 %v69
  %1690 = vmatprep.subr.mxu0 0.0
  %1691 = vmatpush1.msra.mxu0 %v72
  %1692 = vmatprep.subr.mxu0 0.0
  %1693 = vmatpush1.msra.mxu0 %v75
  %1694 = vmatprep.subr.mxu0 0.0
  %1695 = vmatpush1.msra.mxu0 %v78
  %1696 = vmatprep.subr.mxu0 0.0
  %1697 = vmatpush1.msra.mxu0 0.0
  %1698 = vmatprep.subr.mxu0 0.0
  %1699 = vmatpush1.msra.mxu0 0.0
  %1700 = vmatprep.subr.mxu0 0.0
  %1701 = vmatpush1.msra.mxu0 0.0
  %1702 = vmatprep.subr.mxu0 0.0
  %1703 = vmatpush1.msra.mxu0 0.0
  %1704 = vmatprep.subr.mxu0 0.0
  %1705 = vmatpush1.msra.mxu0 0.0
  %1706 = vmatprep.subr.mxu0 0.0
  %1707 = vmatpush1.msra.mxu0 0.0
  %1708 = vmatprep.subr.mxu0 0.0
  %1709 = vmatpush1.msra.mxu0 0.0
  %1710 = vmatprep.subr.mxu0 0.0
  %1711 = vmatpush1.msra.mxu0 0.0
  %1712 = vmatprep.subr.mxu0 0.0
  %1713 = vmatpush1.msra.mxu0 0.0
  %1714 = vmatprep.subr.mxu0 0.0
  %1715 = vmatpush1.msra.mxu0 0.0
  %1716 = vmatprep.subr.mxu0 0.0
  %1717 = vmatpush1.msra.mxu0 0.0
  %1718 = vmatprep.subr.mxu0 0.0
  %1719 = vmatpush1.msra.mxu0 0.0
  %1720 = vmatprep.subr.mxu0 0.0
  %1721 = vmatpush1.msra.mxu0 0.0
  %1722 = vmatprep.subr.mxu0 0.0
  %1723 = vmatpush1.msra.mxu0 0.0
  %1724 = vmatprep.subr.mxu0 0.0
  %1725 = vmatpush1.msra.mxu0 0.0
  %1726 = vmatprep.subr.mxu0 0.0
  %1727 = vmatpush1.msra.mxu0 0.0
  %1728 = vmatprep.mubr.f32.mxu0 0.0
  %1729 = vmatmul.mubr.f32.gmra.mrb[0].mxu0 %v1518
  %v1730 = vpop.f32.mrb[0].mxu0
  %v1731 = vadd.f32 0.0, %v1730
  %v1732 = vpop.f32.mrb[0].mxu0
  %1733 = vdwg.mxu0
  %v1736 = vcombine.low %v1660, %v1662
  %v1738 = vunpack.c.l.s4 1983009808
  %v1739 = vunpack.c.0.s8 %v1738
  %v1740 = vlaneseq
  %v1741 = vshrl.u32 %v1740, 7
  %v1742 = vsub.s32 %v1739, %v1741
  %v1743 = vrot.slane %v1736, %v1742
  %v1745 = vadd.f32 %v1592, %v1743
  %v1746 = vxor.u32 %v1745, 2147483648
  %v1747 = vmul.f32 %v1746, 1.442695
  %v1748 = vpow.pop %v1747
  %v1749 = vadd.f32 %v1748, 1.0
  %v1750 = vrcp.pop %v1749
  %v1751 = vmul.f32 1.0, %v1750
  %v1752 = vadd.f32 %v1731, %v262
  %v1753 = vmul.f32 %v1751, %v1752
  %v1755 = vrot.slane %v1592, 4
  %v1757 = vadd.f32 %v1755, %v1753
  %v1758 = vtanh.pop %v1757
  %v1760 = vrot.slane %v1751, 2
  %v1762 = vsub.f32 1.0, %v1760
  %v1763 = vmul.f32 %v1762, %v1758
  %v1764 = vmul.f32 %v1760, %v1518
  %v1765 = vadd.f32 %v1763, %v1764
  %1766 = vmatprep.subr.mxu0 0.0
  %1767 = vmatpush1.msra.mxu0 %v80
  %1768 = vmatprep.subr.mxu0 0.0
  %1769 = vmatpush1.msra.mxu0 %v81
  %1770 = vmatprep.subr.mxu0 0.0
  %1771 = vmatpush1.msra.mxu0 %v82
  %1772 = vmatprep.subr.mxu0 0.0
  %1773 = vmatpush1.msra.mxu0 %v83
  %1774 = vmatprep.subr.mxu0 0.0
  %1775 = vmatpush1.msra.mxu0 %v84
  %1776 = vmatprep.subr.mxu0 0.0
  %1777 = vmatpush1.msra.mxu0 %v85
  %1778 = vmatprep.subr.mxu0 0.0
  %1779 = vmatpush1.msra.mxu0 %v86
  %1780 = vmatprep.subr.mxu0 0.0
  %1781 = vmatpush1.msra.mxu0 %v87
  %1782 = vmatprep.subr.mxu0 0.0
  %1783 = vmatpush1.msra.mxu0 %v88
  %1784 = vmatprep.subr.mxu0 0.0
  %1785 = vmatpush1.msra.mxu0 %v89
  %1786 = vmatprep.subr.mxu0 0.0
  %1787 = vmatpush1.msra.mxu0 %v90
  %1788 = vmatprep.subr.mxu0 0.0
  %1789 = vmatpush1.msra.mxu0 %v91
  %1790 = vmatprep.subr.mxu0 0.0
  %1791 = vmatpush1.msra.mxu0 %v92
  %1792 = vmatprep.subr.mxu0 0.0
  %1793 = vmatpush1.msra.mxu0 %v93
  %1794 = vmatprep.subr.mxu0 0.0
  %1795 = vmatpush1.msra.mxu0 %v94
  %1796 = vmatprep.subr.mxu0 0.0
  %1797 = vmatpush1.msra.mxu0 %v95
  %1798 = vmatprep.subr.mxu0 0.0
  %1799 = vmatpush1.msra.mxu0 0.0
  %1800 = vmatprep.subr.mxu0 0.0
  %1801 = vmatpush1.msra.mxu0 0.0
  %1802 = vmatprep.subr.mxu0 0.0
  %1803 = vmatpush1.msra.mxu0 0.0
  %1804 = vmatprep.subr.mxu0 0.0
  %1805 = vmatpush1.msra.mxu0 0.0
  %1806 = vmatprep.subr.mxu0 0.0
  %1807 = vmatpush1.msra.mxu0 0.0
  %1808 = vmatprep.subr.mxu0 0.0
  %1809 = vmatpush1.msra.mxu0 0.0
  %1810 = vmatprep.subr.mxu0 0.0
  %1811 = vmatpush1.msra.mxu0 0.0
  %1812 = vmatprep.subr.mxu0 0.0
  %1813 = vmatpush1.msra.mxu0 0.0
  %1814 = vmatprep.subr.mxu0 0.0
  %1815 = vmatpush1.msra.mxu0 0.0
  %1816 = vmatprep.subr.mxu0 0.0
  %1817 = vmatpush1.msra.mxu0 0.0
  %1818 = vmatprep.subr.mxu0 0.0
  %1819 = vmatpush1.msra.mxu0 0.0
  %1820 = vmatprep.subr.mxu0 0.0
  %1821 = vmatpush1.msra.mxu0 0.0
  %1822 = vmatprep.subr.mxu0 0.0
  %1823 = vmatpush1.msra.mxu0 0.0
  %1824 = vmatprep.subr.mxu0 0.0
  %1825 = vmatpush1.msra.mxu0 0.0
  %1826 = vmatprep.subr.mxu0 0.0
  %1827 = vmatpush1.msra.mxu0 0.0
  %1828 = vmatprep.subr.mxu0 0.0
  %1829 = vmatpush1.msra.mxu0 0.0
  %1830 = vmatprep.mubr.f32.mxu0 0.0
  %1831 = vmatmul.mubr.f32.gmra.mrb[0].mxu0 %v1765
  %v1832 = vpop.f32.mrb[0].mxu0
  %v1833 = vadd.f32 %v282, %v1832
  %v1834 = vpop.f32.mrb[0].mxu0
  %1835 = vdwg.mxu0
  %s1836 = scalar_lea.vmem %s6, 12
  %1837 = vst.msk [vmem:[%s1836] sm:$0x3] %vm354, %v1833
  %s1838 = scalar_lea.vmem %s0, 42
  %v1839 = vld [vmem:[%s1838] sm:$0x3f]
  %1840 = vmatprep.subr.mxu0 %v32
  %1841 = vmatpush1.msra.mxu0 %v31
  %1842 = vmatprep.subr.mxu0 %v35
  %1843 = vmatpush1.msra.mxu0 %v34
  %1844 = vmatprep.subr.mxu0 %v38
  %1845 = vmatpush1.msra.mxu0 %v37
  %1846 = vmatprep.subr.mxu0 %v41
  %1847 = vmatpush1.msra.mxu0 %v40
  %1848 = vmatprep.subr.mxu0 %v44
  %1849 = vmatpush1.msra.mxu0 %v43
  %1850 = vmatprep.subr.mxu0 %v47
  %1851 = vmatpush1.msra.mxu0 %v46
  %1852 = vmatprep.subr.mxu0 %v50
  %1853 = vmatpush1.msra.mxu0 %v49
  %1854 = vmatprep.subr.mxu0 %v53
  %1855 = vmatpush1.msra.mxu0 %v52
  %1856 = vmatprep.subr.mxu0 %v56
  %1857 = vmatpush1.msra.mxu0 %v55
  %1858 = vmatprep.subr.mxu0 %v59
  %1859 = vmatpush1.msra.mxu0 %v58
  %1860 = vmatprep.subr.mxu0 %v62
  %1861 = vmatpush1.msra.mxu0 %v61
  %1862 = vmatprep.subr.mxu0 %v65
  %1863 = vmatpush1.msra.mxu0 %v64
  %1864 = vmatprep.subr.mxu0 %v68
  %1865 = vmatpush1.msra.mxu0 %v67
  %1866 = vmatprep.subr.mxu0 %v71
  %1867 = vmatpush1.msra.mxu0 %v70
  %1868 = vmatprep.subr.mxu0 %v74
  %1869 = vmatpush1.msra.mxu0 %v73
  %1870 = vmatprep.subr.mxu0 %v77
  %1871 = vmatpush1.msra.mxu0 %v76
  %1872 = vmatprep.subr.mxu0 0.0
  %1873 = vmatpush1.msra.mxu0 0.0
  %1874 = vmatprep.subr.mxu0 0.0
  %1875 = vmatpush1.msra.mxu0 0.0
  %1876 = vmatprep.subr.mxu0 0.0
  %1877 = vmatpush1.msra.mxu0 0.0
  %1878 = vmatprep.subr.mxu0 0.0
  %1879 = vmatpush1.msra.mxu0 0.0
  %1880 = vmatprep.subr.mxu0 0.0
  %1881 = vmatpush1.msra.mxu0 0.0
  %1882 = vmatprep.subr.mxu0 0.0
  %1883 = vmatpush1.msra.mxu0 0.0
  %1884 = vmatprep.subr.mxu0 0.0
  %1885 = vmatpush1.msra.mxu0 0.0
  %1886 = vmatprep.subr.mxu0 0.0
  %1887 = vmatpush1.msra.mxu0 0.0
  %1888 = vmatprep.subr.mxu0 0.0
  %1889 = vmatpush1.msra.mxu0 0.0
  %1890 = vmatprep.subr.mxu0 0.0
  %1891 = vmatpush1.msra.mxu0 0.0
  %1892 = vmatprep.subr.mxu0 0.0
  %1893 = vmatpush1.msra.mxu0 0.0
  %1894 = vmatprep.subr.mxu0 0.0
  %1895 = vmatpush1.msra.mxu0 0.0
  %1896 = vmatprep.subr.mxu0 0.0
  %1897 = vmatpush1.msra.mxu0 0.0
  %1898 = vmatprep.subr.mxu0 0.0
  %1899 = vmatpush1.msra.mxu0 0.0
  %1900 = vmatprep.subr.mxu0 0.0
  %1901 = vmatpush1.msra.mxu0 0.0
  %1902 = vmatprep.subr.mxu0 0.0
  %1903 = vmatpush1.msra.mxu0 0.0
  %1904 = vmatprep.mubr.f32.mxu0 0.0
  %1905 = vmatmul.mubr.f32.gmra.mrb[0].mxu0 %v1765
  %v1906 = vpop.f32.mrb[0].mxu0
  %v1907 = vadd.f32 0.0, %v1906
  %v1908 = vpop.f32.mrb[0].mxu0
  %v1909 = vadd.f32 0.0, %v1908
  %1910 = vdwg.mxu0
  %1911 = vmatprep.subr.mxu0 0.0
  %1912 = vmatpush1.msra.mxu0 %v33
  %1913 = vmatprep.subr.mxu0 0.0
  %1914 = vmatpush1.msra.mxu0 %v36
  %1915 = vmatprep.subr.mxu0 0.0
  %1916 = vmatpush1.msra.mxu0 %v39
  %1917 = vmatprep.subr.mxu0 0.0
  %1918 = vmatpush1.msra.mxu0 %v42
  %1919 = vmatprep.subr.mxu0 0.0
  %1920 = vmatpush1.msra.mxu0 %v45
  %1921 = vmatprep.subr.mxu0 0.0
  %1922 = vmatpush1.msra.mxu0 %v48
  %1923 = vmatprep.subr.mxu0 0.0
  %1924 = vmatpush1.msra.mxu0 %v51
  %1925 = vmatprep.subr.mxu0 0.0
  %1926 = vmatpush1.msra.mxu0 %v54
  %1927 = vmatprep.subr.mxu0 0.0
  %1928 = vmatpush1.msra.mxu0 %v57
  %1929 = vmatprep.subr.mxu0 0.0
  %1930 = vmatpush1.msra.mxu0 %v60
  %1931 = vmatprep.subr.mxu0 0.0
  %1932 = vmatpush1.msra.mxu0 %v63
  %1933 = vmatprep.subr.mxu0 0.0
  %1934 = vmatpush1.msra.mxu0 %v66
  %1935 = vmatprep.subr.mxu0 0.0
  %1936 = vmatpush1.msra.mxu0 %v69
  %1937 = vmatprep.subr.mxu0 0.0
  %1938 = vmatpush1.msra.mxu0 %v72
  %1939 = vmatprep.subr.mxu0 0.0
  %1940 = vmatpush1.msra.mxu0 %v75
  %1941 = vmatprep.subr.mxu0 0.0
  %1942 = vmatpush1.msra.mxu0 %v78
  %1943 = vmatprep.subr.mxu0 0.0
  %1944 = vmatpush1.msra.mxu0 0.0
  %1945 = vmatprep.subr.mxu0 0.0
  %1946 = vmatpush1.msra.mxu0 0.0
  %1947 = vmatprep.subr.mxu0 0.0
  %1948 = vmatpush1.msra.mxu0 0.0
  %1949 = vmatprep.subr.mxu0 0.0
  %1950 = vmatpush1.msra.mxu0 0.0
  %1951 = vmatprep.subr.mxu0 0.0
  %1952 = vmatpush1.msra.mxu0 0.0
  %1953 = vmatprep.subr.mxu0 0.0
  %1954 = vmatpush1.msra.mxu0 0.0
  %1955 = vmatprep.subr.mxu0 0.0
  %1956 = vmatpush1.msra.mxu0 0.0
  %1957 = vmatprep.subr.mxu0 0.0
  %1958 = vmatpush1.msra.mxu0 0.0
  %1959 = vmatprep.subr.mxu0 0.0
  %1960 = vmatpush1.msra.mxu0 0.0
  %1961 = vmatprep.subr.mxu0 0.0
  %1962 = vmatpush1.msra.mxu0 0.0
  %1963 = vmatprep.subr.mxu0 0.0
  %1964 = vmatpush1.msra.mxu0 0.0
  %1965 = vmatprep.subr.mxu0 0.0
  %1966 = vmatpush1.msra.mxu0 0.0
  %1967 = vmatprep.subr.mxu0 0.0
  %1968 = vmatpush1.msra.mxu0 0.0
  %1969 = vmatprep.subr.mxu0 0.0
  %1970 = vmatpush1.msra.mxu0 0.0
  %1971 = vmatprep.subr.mxu0 0.0
  %1972 = vmatpush1.msra.mxu0 0.0
  %1973 = vmatprep.subr.mxu0 0.0
  %1974 = vmatpush1.msra.mxu0 0.0
  %1975 = vmatprep.mubr.f32.mxu0 0.0
  %1976 = vmatmul.mubr.f32.gmra.mrb[0].mxu0 %v1765
  %v1977 = vpop.f32.mrb[0].mxu0
  %v1978 = vadd.f32 0.0, %v1977
  %v1979 = vpop.f32.mrb[0].mxu0
  %1980 = vdwg.mxu0
  %v1983 = vcombine.low %v1907, %v1909
  %v1985 = vunpack.c.l.s4 1983009808
  %v1986 = vunpack.c.0.s8 %v1985
  %v1987 = vlaneseq
  %v1988 = vshrl.u32 %v1987, 7
  %v1989 = vsub.s32 %v1986, %v1988
  %v1990 = vrot.slane %v1983, %v1989
  %v1992 = vadd.f32 %v1839, %v1990
  %v1993 = vxor.u32 %v1992, 2147483648
  %v1994 = vmul.f32 %v1993, 1.442695
  %v1995 = vpow.pop %v1994
  %v1996 = vadd.f32 %v1995, 1.0
  %v1997 = vrcp.pop %v1996
  %v1998 = vmul.f32 1.0, %v1997
  %v1999 = vadd.f32 %v1978, %v262
  %v2000 = vmul.f32 %v1998, %v1999
  %v2002 = vrot.slane %v1839, 4
  %v2004 = vadd.f32 %v2002, %v2000
  %v2005 = vtanh.pop %v2004
  %v2007 = vrot.slane %v1998, 2
  %v2009 = vsub.f32 1.0, %v2007
  %v2010 = vmul.f32 %v2009, %v2005
  %v2011 = vmul.f32 %v2007, %v1765
  %v2012 = vadd.f32 %v2010, %v2011
  %2013 = vmatprep.subr.mxu0 0.0
  %2014 = vmatpush1.msra.mxu0 %v80
  %2015 = vmatprep.subr.mxu0 0.0
  %2016 = vmatpush1.msra.mxu0 %v81
  %2017 = vmatprep.subr.mxu0 0.0
  %2018 = vmatpush1.msra.mxu0 %v82
  %2019 = vmatprep.subr.mxu0 0.0
  %2020 = vmatpush1.msra.mxu0 %v83
  %2021 = vmatprep.subr.mxu0 0.0
  %2022 = vmatpush1.msra.mxu0 %v84
  %2023 = vmatprep.subr.mxu0 0.0
  %2024 = vmatpush1.msra.mxu0 %v85
  %2025 = vmatprep.subr.mxu0 0.0
  %2026 = vmatpush1.msra.mxu0 %v86
  %2027 = vmatprep.subr.mxu0 0.0
  %2028 = vmatpush1.msra.mxu0 %v87
  %2029 = vmatprep.subr.mxu0 0.0
  %2030 = vmatpush1.msra.mxu0 %v88
  %2031 = vmatprep.subr.mxu0 0.0
  %2032 = vmatpush1.msra.mxu0 %v89
  %2033 = vmatprep.subr.mxu0 0.0
  %2034 = vmatpush1.msra.mxu0 %v90
  %2035 = vmatprep.subr.mxu0 0.0
  %2036 = vmatpush1.msra.mxu0 %v91
  %2037 = vmatprep.subr.mxu0 0.0
  %2038 = vmatpush1.msra.mxu0 %v92
  %2039 = vmatprep.subr.mxu0 0.0
  %2040 = vmatpush1.msra.mxu0 %v93
  %2041 = vmatprep.subr.mxu0 0.0
  %2042 = vmatpush1.msra.mxu0 %v94
  %2043 = vmatprep.subr.mxu0 0.0
  %2044 = vmatpush1.msra.mxu0 %v95
  %2045 = vmatprep.subr.mxu0 0.0
  %2046 = vmatpush1.msra.mxu0 0.0
  %2047 = vmatprep.subr.mxu0 0.0
  %2048 = vmatpush1.msra.mxu0 0.0
  %2049 = vmatprep.subr.mxu0 0.0
  %2050 = vmatpush1.msra.mxu0 0.0
  %2051 = vmatprep.subr.mxu0 0.0
  %2052 = vmatpush1.msra.mxu0 0.0
  %2053 = vmatprep.subr.mxu0 0.0
  %2054 = vmatpush1.msra.mxu0 0.0
  %2055 = vmatprep.subr.mxu0 0.0
  %2056 = vmatpush1.msra.mxu0 0.0
  %2057 = vmatprep.subr.mxu0 0.0
  %2058 = vmatpush1.msra.mxu0 0.0
  %2059 = vmatprep.subr.mxu0 0.0
  %2060 = vmatpush1.msra.mxu0 0.0
  %2061 = vmatprep.subr.mxu0 0.0
  %2062 = vmatpush1.msra.mxu0 0.0
  %2063 = vmatprep.subr.mxu0 0.0
  %2064 = vmatpush1.msra.mxu0 0.0
  %2065 = vmatprep.subr.mxu0 0.0
  %2066 = vmatpush1.msra.mxu0 0.0
  %2067 = vmatprep.subr.mxu0 0.0
  %2068 = vmatpush1.msra.mxu0 0.0
  %2069 = vmatprep.subr.mxu0 0.0
  %2070 = vmatpush1.msra.mxu0 0.0
  %2071 = vmatprep.subr.mxu0 0.0
  %2072 = vmatpush1.msra.mxu0 0.0
  %2073 = vmatprep.subr.mxu0 0.0
  %2074 = vmatpush1.msra.mxu0 0.0
  %2075 = vmatprep.subr.mxu0 0.0
  %2076 = vmatpush1.msra.mxu0 0.0
  %2077 = vmatprep.mubr.f32.mxu0 0.0
  %2078 = vmatmul.mubr.f32.gmra.mrb[0].mxu0 %v2012
  %v2079 = vpop.f32.mrb[0].mxu0
  %v2080 = vadd.f32 %v282, %v2079
  %v2081 = vpop.f32.mrb[0].mxu0
  %2082 = vdwg.mxu0
  %s2083 = scalar_lea.vmem %s6, 14
  %2084 = vst.msk [vmem:[%s2083] sm:$0x3] %vm354, %v2080
  %2085 = vst [vmem:[%s7] sm:$0x3] %v2012
  // Predicated region
  $region30: #{gru_forward.1} parent=0 // pred_check
    _
  $region31: #{gru_forward.1} parent=0 // pred_check_branch
    %2087 = sbr.rel (0) target = $region33
  $region32: #{gru_forward.1} parent=0 // pred_region
    _
  $region33: #{gru_forward.1} parent=0 // pred_fallthru
    _
  // Predicated region
  $region34: #{gru_forward.1} parent=0 // pred_check
    _
  $region35: #{gru_forward.1} parent=0 // pred_check_branch
    %2089 = sbr.rel (0) target = $region37
  $region36: #{gru_forward.1} parent=0 // pred_region
    _
  $region37: #{gru_forward.1} parent=0 // pred_fallthru
    _
  // Predicated region
  $region38: #{gru_forward.1} parent=0 // pred_check
    _
  $region39: #{gru_forward.1} parent=0 // pred_check_branch
    %2091 = sbr.rel (0) target = $region41
  $region40: #{gru_forward.1} parent=0 // pred_region
    _
  $region41: #{gru_forward.1} parent=0 // pred_fallthru
    _
  // Predicated region
  $region42: #{gru_forward.1} parent=0 // pred_check
    _
  $region43: #{gru_forward.1} parent=0 // pred_check_branch
    %2093 = sbr.rel (0) target = $region45
  $region44: #{gru_forward.1} parent=0 // pred_region
    _
  $region45: #{gru_forward.1} parent=0 // pred_fallthru
    _

</llo_original>
